<compile_context>
chip_gen: v5e
topology: v5e:2x2
jax: 0.10.0
libtpu: 0.0.40
codegen_flags: <defaults>
</compile_context>

<pallas_src>
import functools

import jax
import jax.numpy as jnp
from jax.experimental import pallas as pl
from jax.experimental.pallas import tpu as pltpu


# ----------------------------------------------------------------------------
# Fused kernel
# ----------------------------------------------------------------------------
def _dense_layer_kernel(x_ref, s1_ref, b1_ref, w1_ref, b2_ref, w2_ref,
                        mask_ref, o_ref, xa_buf, col_buf, *, H, W, NB):
    """Fused BN1->ReLU->1x1conv(+BN2 scale)->(+b2)->ReLU->3x3conv(pad=1).

    x tile:   (NB, C_in, H*W)   NB images, channels-first, spatial on lanes
    s1/b1:    (C_in, 1)         folded BN1 scale / bias           (f32)
    w1f:      (C_mid, C_in)     1x1 weight with BN2 scale folded  (bf16)
    b2f:      (C_mid, 1)        folded BN2 bias                   (f32)
    w2mat:    (C_out, 9*C_mid)  3x3 weight, tap-major im2col      (bf16)
    masks:    (9, NB*H*W)       0/1 zero-padding masks per tap    (f32)
    out tile: (NB, C_out, H*W)
    scratch:  xa_buf (C_in, NB*H*W) bf16, col_buf (9*C_mid, NB*H*W) bf16
    """
    HW = H * W
    L = NB * HW

    # ---- Stage 1: BN1 -> ReLU (f32 VPU), pack NB images along lanes --------
    s1 = s1_ref[...]
    b1 = b1_ref[...]
    for b in range(NB):
        xa = jnp.maximum(x_ref[b] * s1 + b1, 0.0)             # (C_in, HW) f32
        xa_buf[:, b * HW:(b + 1) * HW] = xa.astype(jnp.bfloat16)

    # ---- 1x1 conv (BN2 scale folded into w1) -> +b2 -> ReLU ----------------
    y = jnp.dot(w1_ref[...], xa_buf[...],
                preferred_element_type=jnp.float32)           # (C_mid, L) f32
    ya = jnp.maximum(y + b2_ref[...], 0.0)

    # ---- Stage 2: 3x3 conv, padding=1, as one deep-K matmul ----------------
    # Each tap = lane roll (XLU) of ya, zeroed at image boundaries by the
    # precomputed mask, staged (bf16) into the scratch im2col buffer.
    c_mid = ya.shape[0]
    masks = mask_ref[...]                                     # (9, L) f32
    t = 0
    for dy in (-1, 0, 1):
        for dx in (-1, 0, 1):
            shift = dy * W + dx
            if shift == 0:
                masked = ya                                   # center: no mask
            else:
                # shifted[:, q] = ya[:, q + shift]; cross-image wrap hits only
                # positions that the zero-padding mask zeroes anyway.
                shifted = pltpu.roll(ya, shift=(-shift) % L, axis=1)
                masked = shifted * masks[t:t + 1, :]
            col_buf[t * c_mid:(t + 1) * c_mid, :] = masked.astype(jnp.bfloat16)
            t += 1

    out = jnp.dot(w2_ref[...], col_buf[...],
                  preferred_element_type=jnp.float32)         # (C_out, L) f32

    # ---- Writeback: per-image lane slices (offsets multiples of HW) --------
    for b in range(NB):
        o_ref[b] = out[:, b * HW:(b + 1) * HW].astype(o_ref.dtype)


def dense_layer_fused(x_flat, s1, b1, w1f, b2f, w2mat, masks, *, H, W, NB):
    """x_flat: (N, C_in, H*W) f32 -> (N, C_out, H*W) f32."""
    N, c_in, HW = x_flat.shape
    assert HW == H * W and N % NB == 0
    c_mid = w1f.shape[0]
    c_out = w2mat.shape[0]
    L = NB * HW

    # Explicit VMEM budget from the actual block footprint (x2 for default
    # double-buffering of every operand), clamped to stay inside v7x's 64 MiB.
    blk_bytes = (NB * c_in * HW * 4 + NB * c_out * HW * 4       # x / out blocks
                 + 2 * c_in * 4 + c_mid * 4                     # s1, b1, b2f
                 + c_mid * c_in * 2 + c_out * 9 * c_mid * 2     # bf16 weights
                 + 9 * L * 4)                                   # masks
    scratch_bytes = (c_in * L + 9 * c_mid * L) * 2              # bf16 scratch
    vmem_limit = int(min(64 * 2**20,
                         max(8 * 2**20, 4 * (2 * blk_bytes + scratch_bytes))))

    kernel = functools.partial(_dense_layer_kernel, H=H, W=W, NB=NB)
    return pl.pallas_call(
        kernel,
        out_shape=jax.ShapeDtypeStruct((N, c_out, HW), jnp.float32),
        grid_spec=pltpu.PrefetchScalarGridSpec(
            num_scalar_prefetch=0,
            grid=(N // NB,),
            in_specs=[
                pl.BlockSpec((NB, c_in, HW), lambda n: (n, 0, 0)),
                pl.BlockSpec((c_in, 1), lambda n: (0, 0)),
                pl.BlockSpec((c_in, 1), lambda n: (0, 0)),
                pl.BlockSpec((c_mid, c_in), lambda n: (0, 0)),
                pl.BlockSpec((c_mid, 1), lambda n: (0, 0)),
                pl.BlockSpec((c_out, 9 * c_mid), lambda n: (0, 0)),
                pl.BlockSpec((9, L), lambda n: (0, 0)),
            ],
            out_specs=pl.BlockSpec((NB, c_out, HW), lambda n: (n, 0, 0)),
            scratch_shapes=[
                pltpu.VMEM((c_in, L), jnp.bfloat16),        # packed activations
                pltpu.VMEM((9 * c_mid, L), jnp.bfloat16),   # im2col staging
            ],
        ),
        compiler_params=pltpu.CompilerParams(
            dimension_semantics=("parallel",),
            vmem_limit_bytes=vmem_limit),
    )(x_flat, s1, b1, w1f, b2f, w2mat, masks)


# ----------------------------------------------------------------------------
# Helpers (host-side, hoisted out of the kernel hot path)
# ----------------------------------------------------------------------------
def _make_tap_masks(H, W, NB):
    """(9, NB*H*W) 0/1 masks implementing zero padding for each 3x3 tap."""
    HW = H * W
    p = jnp.arange(HW, dtype=jnp.int32)
    yy, xx = p // W, p % W
    rows = []
    for dy in (-1, 0, 1):
        for dx in (-1, 0, 1):
            ok = ((yy + dy >= 0) & (yy + dy <= H - 1)
                  & (xx + dx >= 0) & (xx + dx <= W - 1))
            rows.append(ok.astype(jnp.float32))
    return jnp.tile(jnp.stack(rows, axis=0), (1, NB))


def _pick_batch_block(N, max_nb=8):
    nb = min(N, max_nb)
    while N % nb:
        nb -= 1
    return nb


# ----------------------------------------------------------------------------
# DenseLayer wrapper (parameters + glue)
# ----------------------------------------------------------------------------
class DenseLayerPallas:
    def __init__(self, in_channels, growth_rate, dropout, key):
        self.in_channels = in_channels
        self.growth_rate = growth_rate
        self.bottleneck_expansion = 4
        self.dropout = dropout  # identity at inference
        c_mid = self.bottleneck_expansion * growth_rate
        self.c_mid = c_mid
        eps = 1e-5

        ks = jax.random.split(key, 10)
        # BN1 params (deterministic, non-trivial)
        g1 = 1.0 + 0.1 * jax.random.normal(ks[0], (in_channels,), jnp.float32)
        be1 = 0.1 * jax.random.normal(ks[1], (in_channels,), jnp.float32)
        m1 = 0.1 * jax.random.normal(ks[2], (in_channels,), jnp.float32)
        v1 = 1.0 + 0.1 * jax.random.uniform(ks[3], (in_channels,), jnp.float32)
        # BN2 params
        g2 = 1.0 + 0.1 * jax.random.normal(ks[4], (c_mid,), jnp.float32)
        be2 = 0.1 * jax.random.normal(ks[5], (c_mid,), jnp.float32)
        m2 = 0.1 * jax.random.normal(ks[6], (c_mid,), jnp.float32)
        v2 = 1.0 + 0.1 * jax.random.uniform(ks[7], (c_mid,), jnp.float32)
        # Conv weights (PyTorch shapes: (out, in, kh, kw)).
        w1_oihw = jax.random.normal(ks[8], (c_mid, in_channels, 1, 1),
                                    jnp.float32) * (1.0 / jnp.sqrt(in_channels))
        w2_oihw = jax.random.normal(ks[9], (growth_rate, c_mid, 3, 3),
                                    jnp.float32) * (1.0 / jnp.sqrt(9.0 * c_mid))

        # Fold BN1 into scale/bias:  xa = relu(x*s1 + b1)   (kept f32)
        s1 = g1 / jnp.sqrt(v1 + eps)
        b1 = be1 - m1 * s1
        self.s1 = s1.reshape(in_channels, 1)
        self.b1 = b1.reshape(in_channels, 1)

        # Fold BN2 *scale* into the 1x1 conv weight; keep only the bias add.
        # Weight pre-cast to bf16 (MXU-native); accumulation stays f32.
        s2 = g2 / jnp.sqrt(v2 + eps)
        b2 = be2 - m2 * s2
        self.w1f = (s2[:, None] * w1_oihw[:, :, 0, 0]).astype(jnp.bfloat16)
        self.b2f = b2.reshape(c_mid, 1)                       # (C_mid, 1) f32

        # 3x3 conv weight in tap-major im2col layout (bf16):
        # w2mat[o, (kh*3 + kw)*C_mid + c] = w2_oihw[o, c, kh, kw]
        self.w2mat = jnp.transpose(w2_oihw, (2, 3, 1, 0)).reshape(
            9 * c_mid, growth_rate).T.astype(jnp.bfloat16)    # (C_out, 9*C_mid)

        # keep raw f32 params for the reference check
        self._raw = (g1, be1, m1, v1, g2, be2, m2, v2, w1_oihw, w2_oihw, eps)

    def __call__(self, x):
        # x: NCHW (PyTorch convention) or list of NCHW tensors (concat on C).
        if isinstance(x, (list, tuple)):
            x = jnp.concatenate(x, axis=1)
        N, C, H, W = x.shape
        assert C == self.in_channels
        NB = _pick_batch_block(N)
        masks = _make_tap_masks(H, W, NB)
        # NCHW -> (N, C, H*W): metadata-only reshape, no transpose.
        x_flat = x.reshape(N, C, H * W)
        out_flat = dense_layer_fused(x_flat, self.s1, self.b1, self.w1f,
                                     self.b2f, self.w2mat, masks,
                                     H=H, W=W, NB=NB)
        # Dropout: identity (inference).
        return out_flat.reshape(N, self.growth_rate, H, W)    # NCHW

    # Pure-JAX f32 reference of the PyTorch module (eval mode) for validation.
    def reference(self, x):
        if isinstance(x, (list, tuple)):
            x = jnp.concatenate(x, axis=1)
        g1, be1, m1, v1, g2, be2, m2, v2, w1, w2, eps = self._raw

        def bn(z, g, b, m, v):
            return (z - m[None, :, None, None]) / jnp.sqrt(
                v[None, :, None, None] + eps) * g[None, :, None, None] \
                + b[None, :, None, None]

        z = jnp.maximum(bn(x, g1, be1, m1, v1), 0.0)
        z = jax.lax.conv_general_dilated(
            z, w1, window_strides=(1, 1), padding="VALID",
            dimension_numbers=("NCHW", "OIHW", "NCHW"))
        z = jnp.maximum(bn(z, g2, be2, m2, v2), 0.0)
        z = jax.lax.conv_general_dilated(
            z, w2, window_strides=(1, 1), padding=((1, 1), (1, 1)),
            dimension_numbers=("NCHW", "OIHW", "NCHW"))
        return z


if __name__ == "__main__":
    key = jax.random.PRNGKey(0)
    k_param, k_x = jax.random.split(key)

    in_channels, growth_rate, dropout = 16, 8, 0.2
    N, H, W = 2, 16, 16

    layer = DenseLayerPallas(in_channels, growth_rate, dropout, k_param)
    x = jax.random.normal(k_x, (N, in_channels, H, W), jnp.float32)

    out = layer(x)
    out = jax.block_until_ready(out)

    ref = layer.reference(x)
    assert out.shape == (N, growth_rate, H, W), out.shape
    # bf16 MXU operands (f32 accumulation) -> loosened tolerance vs f32 ref.
    max_err = float(jnp.max(jnp.abs(out - ref)))
    assert jnp.allclose(out, ref, atol=3e-2, rtol=3e-2), max_err

    print("KERNEL_OK")
</pallas_src>

<mosaic_0001>
module attributes {stable_mosaic.version = 11 : i64} {
  func.func @_dense_layer_kernel(%arg0: i32, %arg1: memref<2x16x256xf32, #tpu.memory_space<vmem>>, %arg2: memref<16x1xf32, #tpu.memory_space<vmem>>, %arg3: memref<16x1xf32, #tpu.memory_space<vmem>>, %arg4: memref<32x16xbf16, #tpu.memory_space<vmem>>, %arg5: memref<32x1xf32, #tpu.memory_space<vmem>>, %arg6: memref<8x288xbf16, #tpu.memory_space<vmem>>, %arg7: memref<9x512xf32, #tpu.memory_space<vmem>>, %arg8: memref<2x8x256xf32, #tpu.memory_space<vmem>>, %arg9: memref<16x512xbf16, #tpu.memory_space<vmem>>, %arg10: memref<288x512xbf16, #tpu.memory_space<vmem>>) attributes {dimension_semantics = [#tpu.dimension_semantics<parallel>], iteration_bounds = array<i64: 1>, scalar_prefetch = 0 : i64, scratch_operands = 2 : i64, tpu.core_type = #tpu.core_type<tc>, window_params = [{transform_indices = @transform_0, window_bounds = array<i64: 2, 16, 256>}, {pipeline_mode = #tpu.pipeline_mode<synchronous>, transform_indices = @transform_1, window_bounds = array<i64: 16, 1>}, {pipeline_mode = #tpu.pipeline_mode<synchronous>, transform_indices = @transform_2, window_bounds = array<i64: 16, 1>}, {pipeline_mode = #tpu.pipeline_mode<synchronous>, transform_indices = @transform_3, window_bounds = array<i64: 32, 16>}, {pipeline_mode = #tpu.pipeline_mode<synchronous>, transform_indices = @transform_4, window_bounds = array<i64: 32, 1>}, {pipeline_mode = #tpu.pipeline_mode<synchronous>, transform_indices = @transform_5, window_bounds = array<i64: 8, 288>}, {pipeline_mode = #tpu.pipeline_mode<synchronous>, transform_indices = @transform_6, window_bounds = array<i64: 9, 512>}, {transform_indices = @transform_7, window_bounds = array<i64: 2, 8, 256>}]} {
    %c0 = arith.constant 0 : index
    %c0_0 = arith.constant 0 : index
    %0 = vector.load %arg2[%c0, %c0_0] : memref<16x1xf32, #tpu.memory_space<vmem>>, vector<16x1xf32>
    %c0_1 = arith.constant 0 : index
    %c0_2 = arith.constant 0 : index
    %1 = vector.load %arg3[%c0_1, %c0_2] : memref<16x1xf32, #tpu.memory_space<vmem>>, vector<16x1xf32>
    %c0_3 = arith.constant 0 : index
    %c0_4 = arith.constant 0 : index
    %c0_5 = arith.constant 0 : index
    %2 = vector.load %arg1[%c0_3, %c0_4, %c0_5] : memref<2x16x256xf32, #tpu.memory_space<vmem>>, vector<1x16x256xf32>
    %3 = vector.shape_cast %2 : vector<1x16x256xf32> to vector<16x256xf32>
    %4 = vector.broadcast %0 : vector<16x1xf32> to vector<16x256xf32>
    %5 = arith.mulf %3, %4 : vector<16x256xf32>
    %6 = vector.broadcast %1 : vector<16x1xf32> to vector<16x256xf32>
    %7 = arith.addf %5, %6 : vector<16x256xf32>
    %cst = arith.constant 0.000000e+00 : f32
    %8 = vector.broadcast %cst : f32 to vector<16x256xf32>
    %9 = arith.maximumf %7, %8 : vector<16x256xf32>
    %10 = arith.truncf %9 : vector<16x256xf32> to vector<16x256xbf16>
    %c0_6 = arith.constant 0 : index
    %c0_7 = arith.constant 0 : index
    %11 = vector.load %arg9[%c0_6, %c0_7] : memref<16x512xbf16, #tpu.memory_space<vmem>>, vector<16x256xbf16>
    tpu.vector_store %arg9[%c0_6, %c0_7], %10 {strides = array<i32>} : memref<16x512xbf16, #tpu.memory_space<vmem>>, vector<16x256xbf16>,
    %c1 = arith.constant 1 : index
    %c0_8 = arith.constant 0 : index
    %c0_9 = arith.constant 0 : index
    %12 = vector.load %arg1[%c1, %c0_8, %c0_9] : memref<2x16x256xf32, #tpu.memory_space<vmem>>, vector<1x16x256xf32>
    %13 = vector.shape_cast %12 : vector<1x16x256xf32> to vector<16x256xf32>
    %14 = vector.broadcast %0 : vector<16x1xf32> to vector<16x256xf32>
    %15 = arith.mulf %13, %14 : vector<16x256xf32>
    %16 = vector.broadcast %1 : vector<16x1xf32> to vector<16x256xf32>
    %17 = arith.addf %15, %16 : vector<16x256xf32>
    %cst_10 = arith.constant 0.000000e+00 : f32
    %18 = vector.broadcast %cst_10 : f32 to vector<16x256xf32>
    %19 = arith.maximumf %17, %18 : vector<16x256xf32>
    %20 = arith.truncf %19 : vector<16x256xf32> to vector<16x256xbf16>
    %c0_11 = arith.constant 0 : index
    %c256 = arith.constant 256 : index
    %21 = vector.load %arg9[%c0_11, %c256] : memref<16x512xbf16, #tpu.memory_space<vmem>>, vector<16x256xbf16>
    tpu.vector_store %arg9[%c0_11, %c256], %20 {strides = array<i32>} : memref<16x512xbf16, #tpu.memory_space<vmem>>, vector<16x256xbf16>,
    %c0_12 = arith.constant 0 : index
    %c0_13 = arith.constant 0 : index
    %22 = vector.load %arg4[%c0_12, %c0_13] : memref<32x16xbf16, #tpu.memory_space<vmem>>, vector<32x16xbf16>
    %c0_14 = arith.constant 0 : index
    %c0_15 = arith.constant 0 : index
    %23 = vector.load %arg9[%c0_14, %c0_15] : memref<16x512xbf16, #tpu.memory_space<vmem>>, vector<16x512xbf16>
    %cst_16 = arith.constant dense<0.000000e+00> : vector<32x512xf32>
    %24 = tpu.matmul %22, %23, %cst_16 {dimension_numbers = #tpu.dot_dimension_numbers<[1], [0], [0], [1], [0, 0, 1, 1], [], []>} : vector<32x16xbf16>, vector<16x512xbf16>, vector<32x512xf32> -> vector<32x512xf32>
    %c0_17 = arith.constant 0 : index
    %c0_18 = arith.constant 0 : index
    %25 = vector.load %arg5[%c0_17, %c0_18] : memref<32x1xf32, #tpu.memory_space<vmem>>, vector<32x1xf32>
    %26 = vector.broadcast %25 : vector<32x1xf32> to vector<32x512xf32>
    %27 = arith.addf %24, %26 : vector<32x512xf32>
    %cst_19 = arith.constant 0.000000e+00 : f32
    %28 = vector.broadcast %cst_19 : f32 to vector<32x512xf32>
    %29 = arith.maximumf %27, %28 : vector<32x512xf32>
    %c0_20 = arith.constant 0 : index
    %c0_21 = arith.constant 0 : index
    %30 = vector.load %arg7[%c0_20, %c0_21] : memref<9x512xf32, #tpu.memory_space<vmem>>, vector<9x512xf32>
    %c17_i32 = arith.constant 17 : i32
    %31 = tpu.dynamic_rotate %29 by %c17_i32 dim 1 : vector<32x512xf32>, i32 -> vector<32x512xf32>
    %32 = vector.extract_strided_slice %30 {offsets = [0, 0], sizes = [1, 512], strides = [1, 1]} : vector<9x512xf32> to vector<1x512xf32>
    %33 = vector.broadcast %32 : vector<1x512xf32> to vector<32x512xf32>
    %34 = arith.mulf %31, %33 : vector<32x512xf32>
    %35 = arith.truncf %34 : vector<32x512xf32> to vector<32x512xbf16>
    %c0_22 = arith.constant 0 : index
    %c0_23 = arith.constant 0 : index
    %36 = vector.load %arg10[%c0_22, %c0_23] : memref<288x512xbf16, #tpu.memory_space<vmem>>, vector<32x512xbf16>
    tpu.vector_store %arg10[%c0_22, %c0_23], %35 {strides = array<i32>} : memref<288x512xbf16, #tpu.memory_space<vmem>>, vector<32x512xbf16>,
    %c16_i32 = arith.constant 16 : i32
    %37 = tpu.dynamic_rotate %29 by %c16_i32 dim 1 : vector<32x512xf32>, i32 -> vector<32x512xf32>
    %38 = vector.extract_strided_slice %30 {offsets = [1, 0], sizes = [1, 512], strides = [1, 1]} : vector<9x512xf32> to vector<1x512xf32>
    %39 = vector.broadcast %38 : vector<1x512xf32> to vector<32x512xf32>
    %40 = arith.mulf %37, %39 : vector<32x512xf32>
    %41 = arith.truncf %40 : vector<32x512xf32> to vector<32x512xbf16>
    %c32 = arith.constant 32 : index
    %c0_24 = arith.constant 0 : index
    %42 = vector.load %arg10[%c32, %c0_24] : memref<288x512xbf16, #tpu.memory_space<vmem>>, vector<32x512xbf16>
    tpu.vector_store %arg10[%c32, %c0_24], %41 {strides = array<i32>} : memref<288x512xbf16, #tpu.memory_space<vmem>>, vector<32x512xbf16>,
    %c15_i32 = arith.constant 15 : i32
    %43 = tpu.dynamic_rotate %29 by %c15_i32 dim 1 : vector<32x512xf32>, i32 -> vector<32x512xf32>
    %44 = vector.extract_strided_slice %30 {offsets = [2, 0], sizes = [1, 512], strides = [1, 1]} : vector<9x512xf32> to vector<1x512xf32>
    %45 = vector.broadcast %44 : vector<1x512xf32> to vector<32x512xf32>
    %46 = arith.mulf %43, %45 : vector<32x512xf32>
    %47 = arith.truncf %46 : vector<32x512xf32> to vector<32x512xbf16>
    %c64 = arith.constant 64 : index
    %c0_25 = arith.constant 0 : index
    %48 = vector.load %arg10[%c64, %c0_25] : memref<288x512xbf16, #tpu.memory_space<vmem>>, vector<32x512xbf16>
    tpu.vector_store %arg10[%c64, %c0_25], %47 {strides = array<i32>} : memref<288x512xbf16, #tpu.memory_space<vmem>>, vector<32x512xbf16>,
    %c1_i32 = arith.constant 1 : i32
    %49 = tpu.dynamic_rotate %29 by %c1_i32 dim 1 : vector<32x512xf32>, i32 -> vector<32x512xf32>
    %50 = vector.extract_strided_slice %30 {offsets = [3, 0], sizes = [1, 512], strides = [1, 1]} : vector<9x512xf32> to vector<1x512xf32>
    %51 = vector.broadcast %50 : vector<1x512xf32> to vector<32x512xf32>
    %52 = arith.mulf %49, %51 : vector<32x512xf32>
    %53 = arith.truncf %52 : vector<32x512xf32> to vector<32x512xbf16>
    %c96 = arith.constant 96 : index
    %c0_26 = arith.constant 0 : index
    %54 = vector.load %arg10[%c96, %c0_26] : memref<288x512xbf16, #tpu.memory_space<vmem>>, vector<32x512xbf16>
    tpu.vector_store %arg10[%c96, %c0_26], %53 {strides = array<i32>} : memref<288x512xbf16, #tpu.memory_space<vmem>>, vector<32x512xbf16>,
    %55 = arith.truncf %29 : vector<32x512xf32> to vector<32x512xbf16>
    %c128 = arith.constant 128 : index
    %c0_27 = arith.constant 0 : index
    %56 = vector.load %arg10[%c128, %c0_27] : memref<288x512xbf16, #tpu.memory_space<vmem>>, vector<32x512xbf16>
    tpu.vector_store %arg10[%c128, %c0_27], %55 {strides = array<i32>} : memref<288x512xbf16, #tpu.memory_space<vmem>>, vector<32x512xbf16>,
    %c511_i32 = arith.constant 511 : i32
    %57 = tpu.dynamic_rotate %29 by %c511_i32 dim 1 : vector<32x512xf32>, i32 -> vector<32x512xf32>
    %58 = vector.extract_strided_slice %30 {offsets = [5, 0], sizes = [1, 512], strides = [1, 1]} : vector<9x512xf32> to vector<1x512xf32>
    %59 = vector.broadcast %58 : vector<1x512xf32> to vector<32x512xf32>
    %60 = arith.mulf %57, %59 : vector<32x512xf32>
    %61 = arith.truncf %60 : vector<32x512xf32> to vector<32x512xbf16>
    %c160 = arith.constant 160 : index
    %c0_28 = arith.constant 0 : index
    %62 = vector.load %arg10[%c160, %c0_28] : memref<288x512xbf16, #tpu.memory_space<vmem>>, vector<32x512xbf16>
    tpu.vector_store %arg10[%c160, %c0_28], %61 {strides = array<i32>} : memref<288x512xbf16, #tpu.memory_space<vmem>>, vector<32x512xbf16>,
    %c497_i32 = arith.constant 497 : i32
    %63 = tpu.dynamic_rotate %29 by %c497_i32 dim 1 : vector<32x512xf32>, i32 -> vector<32x512xf32>
    %64 = vector.extract_strided_slice %30 {offsets = [6, 0], sizes = [1, 512], strides = [1, 1]} : vector<9x512xf32> to vector<1x512xf32>
    %65 = vector.broadcast %64 : vector<1x512xf32> to vector<32x512xf32>
    %66 = arith.mulf %63, %65 : vector<32x512xf32>
    %67 = arith.truncf %66 : vector<32x512xf32> to vector<32x512xbf16>
    %c192 = arith.constant 192 : index
    %c0_29 = arith.constant 0 : index
    %68 = vector.load %arg10[%c192, %c0_29] : memref<288x512xbf16, #tpu.memory_space<vmem>>, vector<32x512xbf16>
    tpu.vector_store %arg10[%c192, %c0_29], %67 {strides = array<i32>} : memref<288x512xbf16, #tpu.memory_space<vmem>>, vector<32x512xbf16>,
    %c496_i32 = arith.constant 496 : i32
    %69 = tpu.dynamic_rotate %29 by %c496_i32 dim 1 : vector<32x512xf32>, i32 -> vector<32x512xf32>
    %70 = vector.extract_strided_slice %30 {offsets = [7, 0], sizes = [1, 512], strides = [1, 1]} : vector<9x512xf32> to vector<1x512xf32>
    %71 = vector.broadcast %70 : vector<1x512xf32> to vector<32x512xf32>
    %72 = arith.mulf %69, %71 : vector<32x512xf32>
    %73 = arith.truncf %72 : vector<32x512xf32> to vector<32x512xbf16>
    %c224 = arith.constant 224 : index
    %c0_30 = arith.constant 0 : index
    %74 = vector.load %arg10[%c224, %c0_30] : memref<288x512xbf16, #tpu.memory_space<vmem>>, vector<32x512xbf16>
    tpu.vector_store %arg10[%c224, %c0_30], %73 {strides = array<i32>} : memref<288x512xbf16, #tpu.memory_space<vmem>>, vector<32x512xbf16>,
    %c495_i32 = arith.constant 495 : i32
    %75 = tpu.dynamic_rotate %29 by %c495_i32 dim 1 : vector<32x512xf32>, i32 -> vector<32x512xf32>
    %76 = vector.extract_strided_slice %30 {offsets = [8, 0], sizes = [1, 512], strides = [1, 1]} : vector<9x512xf32> to vector<1x512xf32>
    %77 = vector.broadcast %76 : vector<1x512xf32> to vector<32x512xf32>
    %78 = arith.mulf %75, %77 : vector<32x512xf32>
    %79 = arith.truncf %78 : vector<32x512xf32> to vector<32x512xbf16>
    %c256_31 = arith.constant 256 : index
    %c0_32 = arith.constant 0 : index
    %80 = vector.load %arg10[%c256_31, %c0_32] : memref<288x512xbf16, #tpu.memory_space<vmem>>, vector<32x512xbf16>
    tpu.vector_store %arg10[%c256_31, %c0_32], %79 {strides = array<i32>} : memref<288x512xbf16, #tpu.memory_space<vmem>>, vector<32x512xbf16>,
    %c0_33 = arith.constant 0 : index
    %c0_34 = arith.constant 0 : index
    %81 = vector.load %arg6[%c0_33, %c0_34] : memref<8x288xbf16, #tpu.memory_space<vmem>>, vector<8x288xbf16>
    %c0_35 = arith.constant 0 : index
    %c0_36 = arith.constant 0 : index
    %82 = vector.load %arg10[%c0_35, %c0_36] : memref<288x512xbf16, #tpu.memory_space<vmem>>, vector<288x512xbf16>
    %cst_37 = arith.constant dense<0.000000e+00> : vector<8x512xf32>
    %83 = tpu.matmul %81, %82, %cst_37 {dimension_numbers = #tpu.dot_dimension_numbers<[1], [0], [0], [1], [0, 0, 1, 1], [], []>} : vector<8x288xbf16>, vector<288x512xbf16>, vector<8x512xf32> -> vector<8x512xf32>
    %84 = vector.extract_strided_slice %83 {offsets = [0, 0], sizes = [8, 256], strides = [1, 1]} : vector<8x512xf32> to vector<8x256xf32>
    %c0_38 = arith.constant 0 : index
    %c0_39 = arith.constant 0 : index
    %c0_40 = arith.constant 0 : index
    %85 = vector.load %arg8[%c0_38, %c0_39, %c0_40] : memref<2x8x256xf32, #tpu.memory_space<vmem>>, vector<1x8x256xf32>
    %86 = vector.shape_cast %85 : vector<1x8x256xf32> to vector<8x256xf32>
    %87 = vector.shape_cast %84 : vector<8x256xf32> to vector<1x8x256xf32>
    tpu.vector_store %arg8[%c0_38, %c0_39, %c0_40], %87 {strides = array<i32>} : memref<2x8x256xf32, #tpu.memory_space<vmem>>, vector<1x8x256xf32>,
    %88 = vector.extract_strided_slice %83 {offsets = [0, 256], sizes = [8, 256], strides = [1, 1]} : vector<8x512xf32> to vector<8x256xf32>
    %c1_41 = arith.constant 1 : index
    %c0_42 = arith.constant 0 : index
    %c0_43 = arith.constant 0 : index
    %89 = vector.load %arg8[%c1_41, %c0_42, %c0_43] : memref<2x8x256xf32, #tpu.memory_space<vmem>>, vector<1x8x256xf32>
    %90 = vector.shape_cast %89 : vector<1x8x256xf32> to vector<8x256xf32>
    %91 = vector.shape_cast %88 : vector<8x256xf32> to vector<1x8x256xf32>
    tpu.vector_store %arg8[%c1_41, %c0_42, %c0_43], %91 {strides = array<i32>} : memref<2x8x256xf32, #tpu.memory_space<vmem>>, vector<1x8x256xf32>,
    return
  }
  func.func @transform_0(%arg0: i32) -> (i32, i32, i32) {
    %c0_i32 = arith.constant 0 : i32
    %c0_i32_0 = arith.constant 0 : i32
    %c0_i32_1 = arith.constant 0 : i32
    return %arg0, %c0_i32, %c0_i32_0 : i32, i32, i32
  }
  func.func @transform_1(%arg0: i32) -> (i32, i32) {
    %c0_i32 = arith.constant 0 : i32
    %c0_i32_0 = arith.constant 0 : i32
    %c0_i32_1 = arith.constant 0 : i32
    return %c0_i32, %c0_i32_0 : i32, i32
  }
  func.func @transform_2(%arg0: i32) -> (i32, i32) {
    %c0_i32 = arith.constant 0 : i32
    %c0_i32_0 = arith.constant 0 : i32
    %c0_i32_1 = arith.constant 0 : i32
    return %c0_i32, %c0_i32_0 : i32, i32
  }
  func.func @transform_3(%arg0: i32) -> (i32, i32) {
    %c0_i32 = arith.constant 0 : i32
    %c0_i32_0 = arith.constant 0 : i32
    %c0_i32_1 = arith.constant 0 : i32
    return %c0_i32, %c0_i32_0 : i32, i32
  }
  func.func @transform_4(%arg0: i32) -> (i32, i32) {
    %c0_i32 = arith.constant 0 : i32
    %c0_i32_0 = arith.constant 0 : i32
    %c0_i32_1 = arith.constant 0 : i32
    return %c0_i32, %c0_i32_0 : i32, i32
  }
  func.func @transform_5(%arg0: i32) -> (i32, i32) {
    %c0_i32 = arith.constant 0 : i32
    %c0_i32_0 = arith.constant 0 : i32
    %c0_i32_1 = arith.constant 0 : i32
    return %c0_i32, %c0_i32_0 : i32, i32
  }
  func.func @transform_6(%arg0: i32) -> (i32, i32) {
    %c0_i32 = arith.constant 0 : i32
    %c0_i32_0 = arith.constant 0 : i32
    %c0_i32_1 = arith.constant 0 : i32
    return %c0_i32, %c0_i32_0 : i32, i32
  }
  func.func @transform_7(%arg0: i32) -> (i32, i32, i32) {
    %c0_i32 = arith.constant 0 : i32
    %c0_i32_0 = arith.constant 0 : i32
    %c0_i32_1 = arith.constant 0 : i32
    return %arg0, %c0_i32, %c0_i32_0 : i32, i32, i32
  }
}

</mosaic_0001>

<llo_original>
// kernel: tpu_custom_call.1
$region0: #{tpu_custom_call.1}
  #allocation0 [shape = 'u32[]', space=smem, size = 0x4, offset = 0x4, fixed_abs, tag = 'smem constant byte address 0x4 - core index']
  #allocation1 [shape = 'u32[72,128]{1,0:T(1,128)}', space=vmem, size = 0x9000, scoped, tag = 'internal scratch']
  #allocation2 [shape = 'bf16[16,512]{1,0:T(8,128)(2,1)}', space=vmem, size = 0x4000, scoped, tag = 'scratch operand']
  #allocation3 [shape = 'bf16[288,512]{1,0:T(8,128)(2,1)}', space=vmem, size = 0x48000, scoped, tag = 'scratch operand']
  %s0 = inlined_call_operand.hbm [shape: f32[2,16,256], index: 0, kind: input, shape index: {}]
  %s1 = inlined_call_operand.vmem [shape: f32[16,1], index: 1, kind: input, shape index: {}]
  %s2 = inlined_call_operand.vmem [shape: f32[16,1], index: 2, kind: input, shape index: {}]
  %s3 = inlined_call_operand.vmem [shape: bf16[32,16], index: 3, kind: input, shape index: {}]
  %s4 = inlined_call_operand.vmem [shape: f32[32,1], index: 4, kind: input, shape index: {}]
  %s5 = inlined_call_operand.vmem [shape: bf16[8,288], index: 5, kind: input, shape index: {}]
  %s6 = inlined_call_operand.hbm [shape: f32[9,512], index: 6, kind: input, shape index: {}]
  %s7 = inlined_call_operand.hbm [shape: f32[2,8,256], index: 7, kind: output, shape index: {}]
  %s8 = sld [smem:[#allocation0]]
  $region46: #{tpu_custom_call.1} parent=0
    _
  %s10 = ssub.s32 1, %s8
  %s11 = scalar_select 0, %s10, %s8
  $region1: #{tpu_custom_call.1} parent=0
    #allocation4 [shape = 'u8[32768]{0}', space=vmem, size = 0x8000, scoped, tag = 'input window, operand 0, single buffered']
    #allocation5 [shape = 's32[1]{0}', space=sflag, size = 0x4, scoped, tag = 'scoped memory for tpu_custom_call.1']
    #allocation6 [shape = 's32[1]{0}', space=sflag, size = 0x4, scoped, tag = 'scoped memory for tpu_custom_call.1']
    #allocation7 [shape = 'u8[32768]{0}', space=vmem, size = 0x8000, scoped, tag = 'input window, operand 6, single buffered']
    #allocation8 [shape = 's32[1]{0}', space=sflag, size = 0x4, scoped, tag = 'scoped memory for tpu_custom_call.1']
    #allocation9 [shape = 'u8[16384]{0}', space=vmem, size = 0x4000, scoped, tag = 'output window, operand 0, single buffered']
    %12 = vsyncpa [#allocation5], 0
    %13 = vsyncpa [#allocation8], 0
    %14 = vsyncpa [#allocation6], 0
    // Predicated region
    $region2: #{tpu_custom_call.1} parent=1 // pred_check
      _
    $region3: #{tpu_custom_call.1} parent=1 // pred_check_branch
      %16 = sbr.rel (0) target = $region5
    $region4: #{tpu_custom_call.1} parent=1 // pred_region
      %18 = vsyncadd [#allocation5], 0
      %s19 = sshll.u32 %s0, 4
      %s20 = int_to_ptr.hbm [resolvable:$true] %s19
      %s21 = sshll.u32 [#allocation4], 4
      %s22 = int_to_ptr.vmem [resolvable:$true] %s21
      %27 = dma.hbm_to_vmem [thread:$0]  %s20, 1024, %s22, [#allocation5], 256, 256, 16
    $region5: #{tpu_custom_call.1} parent=1 // pred_fallthru
      _
    // Predicated region
    $region6: #{tpu_custom_call.1} parent=1 // pred_check
      _
    $region7: #{tpu_custom_call.1} parent=1 // pred_check_branch
      %29 = sbr.rel (0) target = $region9
    $region8: #{tpu_custom_call.1} parent=1 // pred_region
      _
    $region9: #{tpu_custom_call.1} parent=1 // pred_fallthru
      _
    // Predicated region
    $region10: #{tpu_custom_call.1} parent=1 // pred_check
      _
    $region11: #{tpu_custom_call.1} parent=1 // pred_check_branch
      %31 = sbr.rel (0) target = $region13
    $region12: #{tpu_custom_call.1} parent=1 // pred_region
      _
    $region13: #{tpu_custom_call.1} parent=1 // pred_fallthru
      _
    // Predicated region
    $region14: #{tpu_custom_call.1} parent=1 // pred_check
      _
    $region15: #{tpu_custom_call.1} parent=1 // pred_check_branch
      %33 = sbr.rel (0) target = $region17
    $region16: #{tpu_custom_call.1} parent=1 // pred_region
      _
    $region17: #{tpu_custom_call.1} parent=1 // pred_fallthru
      _
    // Predicated region
    $region18: #{tpu_custom_call.1} parent=1 // pred_check
      _
    $region19: #{tpu_custom_call.1} parent=1 // pred_check_branch
      %35 = sbr.rel (0) target = $region21
    $region20: #{tpu_custom_call.1} parent=1 // pred_region
      _
    $region21: #{tpu_custom_call.1} parent=1 // pred_fallthru
      _
    // Predicated region
    $region22: #{tpu_custom_call.1} parent=1 // pred_check
      _
    $region23: #{tpu_custom_call.1} parent=1 // pred_check_branch
      %37 = sbr.rel (0) target = $region25
    $region24: #{tpu_custom_call.1} parent=1 // pred_region
      _
    $region25: #{tpu_custom_call.1} parent=1 // pred_fallthru
      _
    // Predicated region
    $region26: #{tpu_custom_call.1} parent=1 // pred_check
      _
    $region27: #{tpu_custom_call.1} parent=1 // pred_check_branch
      %39 = sbr.rel (0) target = $region29
    $region28: #{tpu_custom_call.1} parent=1 // pred_region
      %41 = vsyncadd [#allocation8], 0
      %s42 = sshll.u32 %s6, 4
      %s43 = int_to_ptr.hbm [resolvable:$true] %s42
      %s44 = sshll.u32 [#allocation7], 4
      %s45 = int_to_ptr.vmem [resolvable:$true] %s44
      %50 = dma.hbm_to_vmem [thread:$0]  %s43, 1024, %s45, [#allocation8], 512, 512, 32
    $region29: #{tpu_custom_call.1} parent=1 // pred_fallthru
      _
    // Predicated region
    $region30: #{tpu_custom_call.1} parent=1 // pred_check
      _
    $region31: #{tpu_custom_call.1} parent=1 // pred_check_branch
      %52 = sbr.rel (0) target = $region33
    $region32: #{tpu_custom_call.1} parent=1 // pred_region
      %54 = dma.done [#allocation5], 1024
    $region33: #{tpu_custom_call.1} parent=1 // pred_fallthru
      _
    // Predicated region
    $region34: #{tpu_custom_call.1} parent=1 // pred_check
      _
    $region35: #{tpu_custom_call.1} parent=1 // pred_check_branch
      %56 = sbr.rel (0) target = $region37
    $region36: #{tpu_custom_call.1} parent=1 // pred_region
      %58 = dma.done [#allocation8], 1024
    $region37: #{tpu_custom_call.1} parent=1 // pred_fallthru
      _
    %v60 = vld [vmem:[%s1] sm:$0xff]
    %v61 = vld [vmem:[%s1 + $0x8] sm:$0xff]
    %v62 = vld [vmem:[%s2] sm:$0xff]
    %v63 = vld [vmem:[%s2 + $0x8] sm:$0xff]
    %v64 = vld [vmem:[#allocation4] sm:$0xff]
    %v65 = vld [vmem:[#allocation4 + $0x8] sm:$0xff]
    %v66 = vld [vmem:[#allocation4 + $0x10] sm:$0xff]
    %v67 = vld [vmem:[#allocation4 + $0x18] sm:$0xff]
    %69 = vset.pattern.permute.xlu0 0
    %70 = vperm.xlu0 %69, %v60
    %v71 = vpop.permute.xlu0 %70
    %74 = vset.pattern.permute.xlu0 0
    %75 = vperm.xlu0 %74, %v61
    %v76 = vpop.permute.xlu0 %75
    %v78 = vmul.f32 %v64, %v71
    %v79 = vmul.f32 %v65, %v71
    %v80 = vmul.f32 %v66, %v76
    %v81 = vmul.f32 %v67, %v76
    %83 = vset.pattern.permute.xlu0 0
    %84 = vperm.xlu0 %83, %v62
    %v85 = vpop.permute.xlu0 %84
    %88 = vset.pattern.permute.xlu0 0
    %89 = vperm.xlu0 %88, %v63
    %v90 = vpop.permute.xlu0 %89
    %v92 = vadd.f32 %v78, %v85
    %v93 = vadd.f32 %v79, %v85
    %v94 = vadd.f32 %v80, %v90
    %v95 = vadd.f32 %v81, %v90
    %v96 = vmax.f32 %v92, 0.0
    %v97 = vmax.f32 %v93, 0.0
    %v98 = vmax.f32 %v94, 0.0
    %v99 = vmax.f32 %v95, 0.0
    %v100 = vpack.c.bf16 %v97, %v96
    %v101 = vpack.c.bf16 %v99, %v98
    %102 = vst [vmem:[#allocation2] sm:$0xff] %v100
    %103 = vst [vmem:[#allocation2 + $0x10] sm:$0xff] %v101
    %s104 = scalar_lea.vmem [#allocation4], 32
    %v105 = vld [vmem:[%s104] sm:$0xff]
    %v106 = vld [vmem:[%s104 + $0x8] sm:$0xff]
    %v107 = vld [vmem:[%s104 + $0x10] sm:$0xff]
    %v108 = vld [vmem:[%s104 + $0x18] sm:$0xff]
    %v109 = vmul.f32 %v105, %v71
    %v110 = vmul.f32 %v106, %v71
    %v111 = vmul.f32 %v107, %v76
    %v112 = vmul.f32 %v108, %v76
    %v113 = vadd.f32 %v109, %v85
    %v114 = vadd.f32 %v110, %v85
    %v115 = vadd.f32 %v111, %v90
    %v116 = vadd.f32 %v112, %v90
    %v117 = vmax.f32 %v113, 0.0
    %v118 = vmax.f32 %v114, 0.0
    %v119 = vmax.f32 %v115, 0.0
    %v120 = vmax.f32 %v116, 0.0
    %v121 = vpack.c.bf16 %v118, %v117
    %v122 = vpack.c.bf16 %v120, %v119
    %123 = vst [vmem:[#allocation2 + $0x8] sm:$0xff] %v121
    %124 = vst [vmem:[#allocation2 + $0x18] sm:$0xff] %v122
    %v125 = vld [vmem:[%s3] sm:$0xf]
    %v126 = vld [vmem:[%s3 + $0x4] sm:$0xf]
    %v127 = vld [vmem:[%s3 + $0x8] sm:$0xf]
    %v128 = vld [vmem:[%s3 + $0xc] sm:$0xf]
    %v129 = vld [vmem:[#allocation2] sm:$0xff]
    %v130 = vld [vmem:[#allocation2 + $0x8] sm:$0xff]
    %v131 = vld [vmem:[#allocation2 + $0x10] sm:$0xff]
    %v132 = vld [vmem:[#allocation2 + $0x18] sm:$0xff]
    %v133 = vld [vmem:[%s4] sm:$0xff]
    %v134 = vld [vmem:[%s4 + $0x8] sm:$0xff]
    %v135 = vld [vmem:[%s4 + $0x10] sm:$0xff]
    %v136 = vld [vmem:[%s4 + $0x18] sm:$0xff]
    %138 = vset.pattern.permute.xlu0 0
    %139 = vperm.xlu0 %138, %v133
    %v140 = vpop.permute.xlu0 %139
    %143 = vset.pattern.permute.xlu0 0
    %144 = vperm.xlu0 %143, %v134
    %v145 = vpop.permute.xlu0 %144
    %148 = vset.pattern.permute.xlu0 0
    %149 = vperm.xlu0 %148, %v135
    %v150 = vpop.permute.xlu0 %149
    %153 = vset.pattern.permute.xlu0 0
    %154 = vperm.xlu0 %153, %v136
    %v155 = vpop.permute.xlu0 %154
    %v161 = vunpack.c.l.b16 %v125
    %v162 = vunpack.c.l.b16 %v126
    %v163 = vunpack.c.l.b16 %v127
    %v164 = vunpack.c.l.b16 %v128
    %v165 = vpack.c.b16 %v162, %v161
    %v166 = vpack.c.b16 %v164, %v163
    %v171 = vunpack.c.l.b16 %v129
    %v172 = vunpack.c.h.b16 %v129
    %v173 = vunpack.c.l.b16 %v130
    %v174 = vunpack.c.h.b16 %v130
    %v175 = vunpack.c.l.b16 %v131
    %v176 = vunpack.c.h.b16 %v131
    %v177 = vunpack.c.l.b16 %v132
    %v178 = vunpack.c.h.b16 %v132
    %v179 = vpack.c.b16 %v175, %v171
    %v180 = vpack.c.b16 %v176, %v172
    %v181 = vpack.c.b16 %v177, %v173
    %v182 = vpack.c.b16 %v178, %v174
    %vm187 = vcmask 130048
    %v189 = vsel %vm187, %v165, 0
    %v192 = vsel %vm187, %v166, 0
    %194 = vmatpush.bf16.msra.mxu0 0
    %195 = vmatpush.bf16.msra.mxu0 0
    %196 = vmatpush.bf16.msra.mxu0 0
    %197 = vmatpush.bf16.msra.mxu0 0
    %198 = vmatpush.bf16.msra.mxu0 0
    %199 = vmatpush.bf16.msra.mxu0 0
    %200 = vmatpush.bf16.msra.mxu0 0
    %201 = vmatpush.bf16.msra.mxu0 %v179
    %202 = vmatmul.bf16.gmra.mxu0 %v189
    %v203 = vpop.f32.mrf.mxu0
    %v204 = vadd.f32 %v140, %v203
    %v205 = vpop.f32.mrf.mxu0
    %v206 = vadd.f32 %v145, %v205
    %207 = vmatmul.bf16.gmra.mxu0 %v192
    %v208 = vpop.f32.mrf.mxu0
    %v209 = vadd.f32 %v150, %v208
    %v210 = vpop.f32.mrf.mxu0
    %v211 = vadd.f32 %v155, %v210
    %212 = vdwg.mxu0
    %213 = vmatpush.bf16.msra.mxu0 0
    %214 = vmatpush.bf16.msra.mxu0 0
    %215 = vmatpush.bf16.msra.mxu0 0
    %216 = vmatpush.bf16.msra.mxu0 0
    %217 = vmatpush.bf16.msra.mxu0 0
    %218 = vmatpush.bf16.msra.mxu0 0
    %219 = vmatpush.bf16.msra.mxu0 0
    %220 = vmatpush.bf16.msra.mxu0 %v180
    %221 = vmatmul.bf16.gmra.mxu0 %v189
    %v222 = vpop.f32.mrf.mxu0
    %v223 = vadd.f32 %v140, %v222
    %v224 = vpop.f32.mrf.mxu0
    %v225 = vadd.f32 %v145, %v224
    %226 = vmatmul.bf16.gmra.mxu0 %v192
    %v227 = vpop.f32.mrf.mxu0
    %v228 = vadd.f32 %v150, %v227
    %v229 = vpop.f32.mrf.mxu0
    %v230 = vadd.f32 %v155, %v229
    %231 = vdwg.mxu0
    %232 = vmatpush.bf16.msra.mxu0 0
    %233 = vmatpush.bf16.msra.mxu0 0
    %234 = vmatpush.bf16.msra.mxu0 0
    %235 = vmatpush.bf16.msra.mxu0 0
    %236 = vmatpush.bf16.msra.mxu0 0
    %237 = vmatpush.bf16.msra.mxu0 0
    %238 = vmatpush.bf16.msra.mxu0 0
    %239 = vmatpush.bf16.msra.mxu0 %v181
    %240 = vmatmul.bf16.gmra.mxu0 %v189
    %v241 = vpop.f32.mrf.mxu0
    %v242 = vadd.f32 %v140, %v241
    %v243 = vpop.f32.mrf.mxu0
    %v244 = vadd.f32 %v145, %v243
    %245 = vmatmul.bf16.gmra.mxu0 %v192
    %v246 = vpop.f32.mrf.mxu0
    %v247 = vadd.f32 %v150, %v246
    %v248 = vpop.f32.mrf.mxu0
    %v249 = vadd.f32 %v155, %v248
    %250 = vdwg.mxu0
    %251 = vmatpush.bf16.msra.mxu0 0
    %252 = vmatpush.bf16.msra.mxu0 0
    %253 = vmatpush.bf16.msra.mxu0 0
    %254 = vmatpush.bf16.msra.mxu0 0
    %255 = vmatpush.bf16.msra.mxu0 0
    %256 = vmatpush.bf16.msra.mxu0 0
    %257 = vmatpush.bf16.msra.mxu0 0
    %258 = vmatpush.bf16.msra.mxu0 %v182
    %259 = vmatmul.bf16.gmra.mxu0 %v189
    %v260 = vpop.f32.mrf.mxu0
    %v261 = vadd.f32 %v140, %v260
    %v262 = vpop.f32.mrf.mxu0
    %v263 = vadd.f32 %v145, %v262
    %264 = vmatmul.bf16.gmra.mxu0 %v192
    %v265 = vpop.f32.mrf.mxu0
    %v266 = vadd.f32 %v150, %v265
    %v267 = vpop.f32.mrf.mxu0
    %v268 = vadd.f32 %v155, %v267
    %269 = vdwg.mxu0
    %v270 = vmax.f32 %v204, 0.0
    %v271 = vmax.f32 %v223, 0.0
    %v272 = vmax.f32 %v242, 0.0
    %v273 = vmax.f32 %v261, 0.0
    %v274 = vmax.f32 %v206, 0.0
    %v275 = vmax.f32 %v225, 0.0
    %v276 = vmax.f32 %v244, 0.0
    %v277 = vmax.f32 %v263, 0.0
    %v278 = vmax.f32 %v209, 0.0
    %v279 = vmax.f32 %v228, 0.0
    %v280 = vmax.f32 %v247, 0.0
    %v281 = vmax.f32 %v266, 0.0
    %v282 = vmax.f32 %v211, 0.0
    %v283 = vmax.f32 %v230, 0.0
    %v284 = vmax.f32 %v249, 0.0
    %v285 = vmax.f32 %v268, 0.0
    %v286 = vld [vmem:[#allocation7] sm:$0xff]
    %v287 = vld [vmem:[#allocation7 + $0x8] sm:$0xff]
    %v288 = vld [vmem:[#allocation7 + $0x10] sm:$0xff]
    %v289 = vld [vmem:[#allocation7 + $0x18] sm:$0xff]
    %v290 = vld [vmem:[#allocation7 + $0x20] sm:$0x1]
    %v291 = vld [vmem:[#allocation7 + $0x28] sm:$0x1]
    %v292 = vld [vmem:[#allocation7 + $0x30] sm:$0x1]
    %v293 = vld [vmem:[#allocation7 + $0x38] sm:$0x1]
    %294 = vrot.lane.b32.xlu0 %v270, 17
    %v295 = vpop.permute.xlu0 %294
    %296 = vrot.lane.b32.xlu0 %v274, 17
    %v297 = vpop.permute.xlu0 %296
    %298 = vrot.lane.b32.xlu0 %v278, 17
    %v299 = vpop.permute.xlu0 %298
    %300 = vrot.lane.b32.xlu0 %v282, 17
    %v301 = vpop.permute.xlu0 %300
    %302 = vrot.lane.b32.xlu0 %v271, 17
    %v303 = vpop.permute.xlu0 %302
    %304 = vrot.lane.b32.xlu0 %v275, 17
    %v305 = vpop.permute.xlu0 %304
    %306 = vrot.lane.b32.xlu0 %v279, 17
    %v307 = vpop.permute.xlu0 %306
    %308 = vrot.lane.b32.xlu0 %v283, 17
    %v309 = vpop.permute.xlu0 %308
    %310 = vrot.lane.b32.xlu0 %v272, 17
    %v311 = vpop.permute.xlu0 %310
    %312 = vrot.lane.b32.xlu0 %v276, 17
    %v313 = vpop.permute.xlu0 %312
    %314 = vrot.lane.b32.xlu0 %v280, 17
    %v315 = vpop.permute.xlu0 %314
    %316 = vrot.lane.b32.xlu0 %v284, 17
    %v317 = vpop.permute.xlu0 %316
    %318 = vrot.lane.b32.xlu0 %v273, 17
    %v319 = vpop.permute.xlu0 %318
    %320 = vrot.lane.b32.xlu0 %v277, 17
    %v321 = vpop.permute.xlu0 %320
    %322 = vrot.lane.b32.xlu0 %v281, 17
    %v323 = vpop.permute.xlu0 %322
    %324 = vrot.lane.b32.xlu0 %v285, 17
    %v325 = vpop.permute.xlu0 %324
    %v326 = vlaneseq
    %v327 = vand.u32 %v326, 127
    %vm328 = vcmp.lt.s32.totalorder %v327, 17
    %v329 = vsel %vm328, %v311, %v319
    %v330 = vsel %vm328, %v313, %v321
    %v331 = vsel %vm328, %v315, %v323
    %v332 = vsel %vm328, %v317, %v325
    %v333 = vsel %vm328, %v303, %v311
    %v334 = vsel %vm328, %v305, %v313
    %v335 = vsel %vm328, %v307, %v315
    %v336 = vsel %vm328, %v309, %v317
    %v337 = vsel %vm328, %v295, %v303
    %v338 = vsel %vm328, %v297, %v305
    %v339 = vsel %vm328, %v299, %v307
    %v340 = vsel %vm328, %v301, %v309
    %v341 = vsel %vm328, %v319, %v295
    %v342 = vsel %vm328, %v321, %v297
    %v343 = vsel %vm328, %v323, %v299
    %v344 = vsel %vm328, %v325, %v301
    %v345 = vperm.slane %v286, 0
    %v346 = vperm.slane %v287, 0
    %v347 = vperm.slane %v288, 0
    %v348 = vperm.slane %v289, 0
    %v349 = vmul.f32 %v341, %v345
    %v350 = vmul.f32 %v337, %v346
    %v351 = vmul.f32 %v333, %v347
    %v352 = vmul.f32 %v329, %v348
    %v353 = vmul.f32 %v342, %v345
    %v354 = vmul.f32 %v338, %v346
    %v355 = vmul.f32 %v334, %v347
    %v356 = vmul.f32 %v330, %v348
    %v357 = vmul.f32 %v343, %v345
    %v358 = vmul.f32 %v339, %v346
    %v359 = vmul.f32 %v335, %v347
    %v360 = vmul.f32 %v331, %v348
    %v361 = vmul.f32 %v344, %v345
    %v362 = vmul.f32 %v340, %v346
    %v363 = vmul.f32 %v336, %v347
    %v364 = vmul.f32 %v332, %v348
    %v365 = vpack.c.bf16 %v350, %v349
    %v366 = vpack.c.bf16 %v352, %v351
    %v367 = vpack.c.bf16 %v354, %v353
    %v368 = vpack.c.bf16 %v356, %v355
    %v369 = vpack.c.bf16 %v358, %v357
    %v370 = vpack.c.bf16 %v360, %v359
    %v371 = vpack.c.bf16 %v362, %v361
    %v372 = vpack.c.bf16 %v364, %v363
    %373 = vst [vmem:[#allocation3] sm:$0xff] %v365
    %374 = vst [vmem:[#allocation3 + $0x8] sm:$0xff] %v366
    %375 = vst [vmem:[#allocation3 + $0x10] sm:$0xff] %v367
    %376 = vst [vmem:[#allocation3 + $0x18] sm:$0xff] %v368
    %377 = vst [vmem:[#allocation3 + $0x20] sm:$0xff] %v369
    %378 = vst [vmem:[#allocation3 + $0x28] sm:$0xff] %v370
    %379 = vst [vmem:[#allocation3 + $0x30] sm:$0xff] %v371
    %380 = vst [vmem:[#allocation3 + $0x38] sm:$0xff] %v372
    %381 = vrot.lane.b32.xlu0 %v270, 16
    %v382 = vpop.permute.xlu0 %381
    %383 = vrot.lane.b32.xlu0 %v274, 16
    %v384 = vpop.permute.xlu0 %383
    %385 = vrot.lane.b32.xlu0 %v278, 16
    %v386 = vpop.permute.xlu0 %385
    %387 = vrot.lane.b32.xlu0 %v282, 16
    %v388 = vpop.permute.xlu0 %387
    %389 = vrot.lane.b32.xlu0 %v271, 16
    %v390 = vpop.permute.xlu0 %389
    %391 = vrot.lane.b32.xlu0 %v275, 16
    %v392 = vpop.permute.xlu0 %391
    %393 = vrot.lane.b32.xlu0 %v279, 16
    %v394 = vpop.permute.xlu0 %393
    %395 = vrot.lane.b32.xlu0 %v283, 16
    %v396 = vpop.permute.xlu0 %395
    %397 = vrot.lane.b32.xlu0 %v272, 16
    %v398 = vpop.permute.xlu0 %397
    %399 = vrot.lane.b32.xlu0 %v276, 16
    %v400 = vpop.permute.xlu0 %399
    %401 = vrot.lane.b32.xlu0 %v280, 16
    %v402 = vpop.permute.xlu0 %401
    %403 = vrot.lane.b32.xlu0 %v284, 16
    %v404 = vpop.permute.xlu0 %403
    %405 = vrot.lane.b32.xlu0 %v273, 16
    %v406 = vpop.permute.xlu0 %405
    %407 = vrot.lane.b32.xlu0 %v277, 16
    %v408 = vpop.permute.xlu0 %407
    %409 = vrot.lane.b32.xlu0 %v281, 16
    %v410 = vpop.permute.xlu0 %409
    %411 = vrot.lane.b32.xlu0 %v285, 16
    %v412 = vpop.permute.xlu0 %411
    %vm413 = vcmp.lt.s32.totalorder %v327, 16
    %v414 = vsel %vm413, %v398, %v406
    %v415 = vsel %vm413, %v400, %v408
    %v416 = vsel %vm413, %v402, %v410
    %v417 = vsel %vm413, %v404, %v412
    %v418 = vsel %vm413, %v390, %v398
    %v419 = vsel %vm413, %v392, %v400
    %v420 = vsel %vm413, %v394, %v402
    %v421 = vsel %vm413, %v396, %v404
    %v422 = vsel %vm413, %v382, %v390
    %v423 = vsel %vm413, %v384, %v392
    %v424 = vsel %vm413, %v386, %v394
    %v425 = vsel %vm413, %v388, %v396
    %v426 = vsel %vm413, %v406, %v382
    %v427 = vsel %vm413, %v408, %v384
    %v428 = vsel %vm413, %v410, %v386
    %v429 = vsel %vm413, %v412, %v388
    %v430 = vperm.slane %v286, 1
    %v431 = vperm.slane %v287, 1
    %v432 = vperm.slane %v288, 1
    %v433 = vperm.slane %v289, 1
    %v434 = vmul.f32 %v426, %v430
    %v435 = vmul.f32 %v422, %v431
    %v436 = vmul.f32 %v418, %v432
    %v437 = vmul.f32 %v414, %v433
    %v438 = vmul.f32 %v427, %v430
    %v439 = vmul.f32 %v423, %v431
    %v440 = vmul.f32 %v419, %v432
    %v441 = vmul.f32 %v415, %v433
    %v442 = vmul.f32 %v428, %v430
    %v443 = vmul.f32 %v424, %v431
    %v444 = vmul.f32 %v420, %v432
    %v445 = vmul.f32 %v416, %v433
    %v446 = vmul.f32 %v429, %v430
    %v447 = vmul.f32 %v425, %v431
    %v448 = vmul.f32 %v421, %v432
    %v449 = vmul.f32 %v417, %v433
    %v450 = vpack.c.bf16 %v435, %v434
    %v451 = vpack.c.bf16 %v437, %v436
    %v452 = vpack.c.bf16 %v439, %v438
    %v453 = vpack.c.bf16 %v441, %v440
    %v454 = vpack.c.bf16 %v443, %v442
    %v455 = vpack.c.bf16 %v445, %v444
    %v456 = vpack.c.bf16 %v447, %v446
    %v457 = vpack.c.bf16 %v449, %v448
    %458 = vst [vmem:[#allocation3 + $0x40] sm:$0xff] %v450
    %459 = vst [vmem:[#allocation3 + $0x48] sm:$0xff] %v451
    %460 = vst [vmem:[#allocation3 + $0x50] sm:$0xff] %v452
    %461 = vst [vmem:[#allocation3 + $0x58] sm:$0xff] %v453
    %462 = vst [vmem:[#allocation3 + $0x60] sm:$0xff] %v454
    %463 = vst [vmem:[#allocation3 + $0x68] sm:$0xff] %v455
    %464 = vst [vmem:[#allocation3 + $0x70] sm:$0xff] %v456
    %465 = vst [vmem:[#allocation3 + $0x78] sm:$0xff] %v457
    %466 = vrot.lane.b32.xlu0 %v270, 15
    %v467 = vpop.permute.xlu0 %466
    %468 = vrot.lane.b32.xlu0 %v274, 15
    %v469 = vpop.permute.xlu0 %468
    %470 = vrot.lane.b32.xlu0 %v278, 15
    %v471 = vpop.permute.xlu0 %470
    %472 = vrot.lane.b32.xlu0 %v282, 15
    %v473 = vpop.permute.xlu0 %472
    %474 = vrot.lane.b32.xlu0 %v271, 15
    %v475 = vpop.permute.xlu0 %474
    %476 = vrot.lane.b32.xlu0 %v275, 15
    %v477 = vpop.permute.xlu0 %476
    %478 = vrot.lane.b32.xlu0 %v279, 15
    %v479 = vpop.permute.xlu0 %478
    %480 = vrot.lane.b32.xlu0 %v283, 15
    %v481 = vpop.permute.xlu0 %480
    %482 = vrot.lane.b32.xlu0 %v272, 15
    %v483 = vpop.permute.xlu0 %482
    %484 = vrot.lane.b32.xlu0 %v276, 15
    %v485 = vpop.permute.xlu0 %484
    %486 = vrot.lane.b32.xlu0 %v280, 15
    %v487 = vpop.permute.xlu0 %486
    %488 = vrot.lane.b32.xlu0 %v284, 15
    %v489 = vpop.permute.xlu0 %488
    %490 = vrot.lane.b32.xlu0 %v273, 15
    %v491 = vpop.permute.xlu0 %490
    %492 = vrot.lane.b32.xlu0 %v277, 15
    %v493 = vpop.permute.xlu0 %492
    %494 = vrot.lane.b32.xlu0 %v281, 15
    %v495 = vpop.permute.xlu0 %494
    %496 = vrot.lane.b32.xlu0 %v285, 15
    %v497 = vpop.permute.xlu0 %496
    %vm498 = vcmp.lt.s32.totalorder %v327, 15
    %v499 = vsel %vm498, %v483, %v491
    %v500 = vsel %vm498, %v485, %v493
    %v501 = vsel %vm498, %v487, %v495
    %v502 = vsel %vm498, %v489, %v497
    %v503 = vsel %vm498, %v475, %v483
    %v504 = vsel %vm498, %v477, %v485
    %v505 = vsel %vm498, %v479, %v487
    %v506 = vsel %vm498, %v481, %v489
    %v507 = vsel %vm498, %v467, %v475
    %v508 = vsel %vm498, %v469, %v477
    %v509 = vsel %vm498, %v471, %v479
    %v510 = vsel %vm498, %v473, %v481
    %v511 = vsel %vm498, %v491, %v467
    %v512 = vsel %vm498, %v493, %v469
    %v513 = vsel %vm498, %v495, %v471
    %v514 = vsel %vm498, %v497, %v473
    %v515 = vperm.slane %v286, 2
    %v516 = vperm.slane %v287, 2
    %v517 = vperm.slane %v288, 2
    %v518 = vperm.slane %v289, 2
    %v519 = vmul.f32 %v511, %v515
    %v520 = vmul.f32 %v507, %v516
    %v521 = vmul.f32 %v503, %v517
    %v522 = vmul.f32 %v499, %v518
    %v523 = vmul.f32 %v512, %v515
    %v524 = vmul.f32 %v508, %v516
    %v525 = vmul.f32 %v504, %v517
    %v526 = vmul.f32 %v500, %v518
    %v527 = vmul.f32 %v513, %v515
    %v528 = vmul.f32 %v509, %v516
    %v529 = vmul.f32 %v505, %v517
    %v530 = vmul.f32 %v501, %v518
    %v531 = vmul.f32 %v514, %v515
    %v532 = vmul.f32 %v510, %v516
    %v533 = vmul.f32 %v506, %v517
    %v534 = vmul.f32 %v502, %v518
    %v535 = vpack.c.bf16 %v520, %v519
    %v536 = vpack.c.bf16 %v522, %v521
    %v537 = vpack.c.bf16 %v524, %v523
    %v538 = vpack.c.bf16 %v526, %v525
    %v539 = vpack.c.bf16 %v528, %v527
    %v540 = vpack.c.bf16 %v530, %v529
    %v541 = vpack.c.bf16 %v532, %v531
    %v542 = vpack.c.bf16 %v534, %v533
    %543 = vst [vmem:[#allocation3 + $0x80] sm:$0xff] %v535
    %544 = vst [vmem:[#allocation3 + $0x88] sm:$0xff] %v536
    %545 = vst [vmem:[#allocation3 + $0x90] sm:$0xff] %v537
    %546 = vst [vmem:[#allocation3 + $0x98] sm:$0xff] %v538
    %547 = vst [vmem:[#allocation3 + $0xa0] sm:$0xff] %v539
    %548 = vst [vmem:[#allocation3 + $0xa8] sm:$0xff] %v540
    %549 = vst [vmem:[#allocation3 + $0xb0] sm:$0xff] %v541
    %550 = vst [vmem:[#allocation3 + $0xb8] sm:$0xff] %v542
    %551 = vrot.lane.b32.xlu0 %v270, 1
    %v552 = vpop.permute.xlu0 %551
    %553 = vrot.lane.b32.xlu0 %v274, 1
    %v554 = vpop.permute.xlu0 %553
    %555 = vrot.lane.b32.xlu0 %v278, 1
    %v556 = vpop.permute.xlu0 %555
    %557 = vrot.lane.b32.xlu0 %v282, 1
    %v558 = vpop.permute.xlu0 %557
    %559 = vrot.lane.b32.xlu0 %v271, 1
    %v560 = vpop.permute.xlu0 %559
    %561 = vrot.lane.b32.xlu0 %v275, 1
    %v562 = vpop.permute.xlu0 %561
    %563 = vrot.lane.b32.xlu0 %v279, 1
    %v564 = vpop.permute.xlu0 %563
    %565 = vrot.lane.b32.xlu0 %v283, 1
    %v566 = vpop.permute.xlu0 %565
    %567 = vrot.lane.b32.xlu0 %v272, 1
    %v568 = vpop.permute.xlu0 %567
    %569 = vrot.lane.b32.xlu0 %v276, 1
    %v570 = vpop.permute.xlu0 %569
    %571 = vrot.lane.b32.xlu0 %v280, 1
    %v572 = vpop.permute.xlu0 %571
    %573 = vrot.lane.b32.xlu0 %v284, 1
    %v574 = vpop.permute.xlu0 %573
    %575 = vrot.lane.b32.xlu0 %v273, 1
    %v576 = vpop.permute.xlu0 %575
    %577 = vrot.lane.b32.xlu0 %v277, 1
    %v578 = vpop.permute.xlu0 %577
    %579 = vrot.lane.b32.xlu0 %v281, 1
    %v580 = vpop.permute.xlu0 %579
    %581 = vrot.lane.b32.xlu0 %v285, 1
    %v582 = vpop.permute.xlu0 %581
    %vm583 = vcmp.lt.s32.totalorder %v327, 1
    %v584 = vsel %vm583, %v568, %v576
    %v585 = vsel %vm583, %v570, %v578
    %v586 = vsel %vm583, %v572, %v580
    %v587 = vsel %vm583, %v574, %v582
    %v588 = vsel %vm583, %v560, %v568
    %v589 = vsel %vm583, %v562, %v570
    %v590 = vsel %vm583, %v564, %v572
    %v591 = vsel %vm583, %v566, %v574
    %v592 = vsel %vm583, %v552, %v560
    %v593 = vsel %vm583, %v554, %v562
    %v594 = vsel %vm583, %v556, %v564
    %v595 = vsel %vm583, %v558, %v566
    %v596 = vsel %vm583, %v576, %v552
    %v597 = vsel %vm583, %v578, %v554
    %v598 = vsel %vm583, %v580, %v556
    %v599 = vsel %vm583, %v582, %v558
    %v600 = vperm.slane %v286, 3
    %v601 = vperm.slane %v287, 3
    %v602 = vperm.slane %v288, 3
    %v603 = vperm.slane %v289, 3
    %v604 = vmul.f32 %v596, %v600
    %v605 = vmul.f32 %v592, %v601
    %v606 = vmul.f32 %v588, %v602
    %v607 = vmul.f32 %v584, %v603
    %v608 = vmul.f32 %v597, %v600
    %v609 = vmul.f32 %v593, %v601
    %v610 = vmul.f32 %v589, %v602
    %v611 = vmul.f32 %v585, %v603
    %v612 = vmul.f32 %v598, %v600
    %v613 = vmul.f32 %v594, %v601
    %v614 = vmul.f32 %v590, %v602
    %v615 = vmul.f32 %v586, %v603
    %v616 = vmul.f32 %v599, %v600
    %v617 = vmul.f32 %v595, %v601
    %v618 = vmul.f32 %v591, %v602
    %v619 = vmul.f32 %v587, %v603
    %v620 = vpack.c.bf16 %v605, %v604
    %v621 = vpack.c.bf16 %v607, %v606
    %v622 = vpack.c.bf16 %v609, %v608
    %v623 = vpack.c.bf16 %v611, %v610
    %v624 = vpack.c.bf16 %v613, %v612
    %v625 = vpack.c.bf16 %v615, %v614
    %v626 = vpack.c.bf16 %v617, %v616
    %v627 = vpack.c.bf16 %v619, %v618
    %628 = vst [vmem:[#allocation3 + $0xc0] sm:$0xff] %v620
    %629 = vst [vmem:[#allocation3 + $0xc8] sm:$0xff] %v621
    %630 = vst [vmem:[#allocation3 + $0xd0] sm:$0xff] %v622
    %631 = vst [vmem:[#allocation3 + $0xd8] sm:$0xff] %v623
    %632 = vst [vmem:[#allocation3 + $0xe0] sm:$0xff] %v624
    %633 = vst [vmem:[#allocation3 + $0xe8] sm:$0xff] %v625
    %634 = vst [vmem:[#allocation3 + $0xf0] sm:$0xff] %v626
    %635 = vst [vmem:[#allocation3 + $0xf8] sm:$0xff] %v627
    %v636 = vpack.c.bf16 %v271, %v270
    %v637 = vpack.c.bf16 %v273, %v272
    %v638 = vpack.c.bf16 %v275, %v274
    %v639 = vpack.c.bf16 %v277, %v276
    %v640 = vpack.c.bf16 %v279, %v278
    %v641 = vpack.c.bf16 %v281, %v280
    %v642 = vpack.c.bf16 %v283, %v282
    %v643 = vpack.c.bf16 %v285, %v284
    %644 = vst [vmem:[#allocation3 + $0x100] sm:$0xff] %v636
    %645 = vst [vmem:[#allocation3 + $0x108] sm:$0xff] %v637
    %646 = vst [vmem:[#allocation3 + $0x110] sm:$0xff] %v638
    %647 = vst [vmem:[#allocation3 + $0x118] sm:$0xff] %v639
    %648 = vst [vmem:[#allocation3 + $0x120] sm:$0xff] %v640
    %649 = vst [vmem:[#allocation3 + $0x128] sm:$0xff] %v641
    %650 = vst [vmem:[#allocation3 + $0x130] sm:$0xff] %v642
    %651 = vst [vmem:[#allocation3 + $0x138] sm:$0xff] %v643
    %652 = vrot.lane.b32.xlu0 %v270, 127
    %v653 = vpop.permute.xlu0 %652
    %654 = vrot.lane.b32.xlu0 %v274, 127
    %v655 = vpop.permute.xlu0 %654
    %656 = vrot.lane.b32.xlu0 %v278, 127
    %v657 = vpop.permute.xlu0 %656
    %658 = vrot.lane.b32.xlu0 %v282, 127
    %v659 = vpop.permute.xlu0 %658
    %660 = vrot.lane.b32.xlu0 %v271, 127
    %v661 = vpop.permute.xlu0 %660
    %662 = vrot.lane.b32.xlu0 %v275, 127
    %v663 = vpop.permute.xlu0 %662
    %664 = vrot.lane.b32.xlu0 %v279, 127
    %v665 = vpop.permute.xlu0 %664
    %666 = vrot.lane.b32.xlu0 %v283, 127
    %v667 = vpop.permute.xlu0 %666
    %668 = vrot.lane.b32.xlu0 %v272, 127
    %v669 = vpop.permute.xlu0 %668
    %670 = vrot.lane.b32.xlu0 %v276, 127
    %v671 = vpop.permute.xlu0 %670
    %672 = vrot.lane.b32.xlu0 %v280, 127
    %v673 = vpop.permute.xlu0 %672
    %674 = vrot.lane.b32.xlu0 %v284, 127
    %v675 = vpop.permute.xlu0 %674
    %676 = vrot.lane.b32.xlu0 %v273, 127
    %v677 = vpop.permute.xlu0 %676
    %678 = vrot.lane.b32.xlu0 %v277, 127
    %v679 = vpop.permute.xlu0 %678
    %680 = vrot.lane.b32.xlu0 %v281, 127
    %v681 = vpop.permute.xlu0 %680
    %682 = vrot.lane.b32.xlu0 %v285, 127
    %v683 = vpop.permute.xlu0 %682
    %vm684 = vcmp.lt.s32.totalorder %v327, 127
    %v685 = vsel %vm684, %v669, %v677
    %v686 = vsel %vm684, %v671, %v679
    %v687 = vsel %vm684, %v673, %v681
    %v688 = vsel %vm684, %v675, %v683
    %v689 = vsel %vm684, %v661, %v669
    %v690 = vsel %vm684, %v663, %v671
    %v691 = vsel %vm684, %v665, %v673
    %v692 = vsel %vm684, %v667, %v675
    %v693 = vsel %vm684, %v653, %v661
    %v694 = vsel %vm684, %v655, %v663
    %v695 = vsel %vm684, %v657, %v665
    %v696 = vsel %vm684, %v659, %v667
    %v697 = vsel %vm684, %v677, %v653
    %v698 = vsel %vm684, %v679, %v655
    %v699 = vsel %vm684, %v681, %v657
    %v700 = vsel %vm684, %v683, %v659
    %v701 = vperm.slane %v286, 5
    %v702 = vperm.slane %v287, 5
    %v703 = vperm.slane %v288, 5
    %v704 = vperm.slane %v289, 5
    %v705 = vmul.f32 %v693, %v701
    %v706 = vmul.f32 %v689, %v702
    %v707 = vmul.f32 %v685, %v703
    %v708 = vmul.f32 %v697, %v704
    %v709 = vmul.f32 %v694, %v701
    %v710 = vmul.f32 %v690, %v702
    %v711 = vmul.f32 %v686, %v703
    %v712 = vmul.f32 %v698, %v704
    %v713 = vmul.f32 %v695, %v701
    %v714 = vmul.f32 %v691, %v702
    %v715 = vmul.f32 %v687, %v703
    %v716 = vmul.f32 %v699, %v704
    %v717 = vmul.f32 %v696, %v701
    %v718 = vmul.f32 %v692, %v702
    %v719 = vmul.f32 %v688, %v703
    %v720 = vmul.f32 %v700, %v704
    %v721 = vpack.c.bf16 %v706, %v705
    %v722 = vpack.c.bf16 %v708, %v707
    %v723 = vpack.c.bf16 %v710, %v709
    %v724 = vpack.c.bf16 %v712, %v711
    %v725 = vpack.c.bf16 %v714, %v713
    %v726 = vpack.c.bf16 %v716, %v715
    %v727 = vpack.c.bf16 %v718, %v717
    %v728 = vpack.c.bf16 %v720, %v719
    %729 = vst [vmem:[#allocation3 + $0x140] sm:$0xff] %v721
    %730 = vst [vmem:[#allocation3 + $0x148] sm:$0xff] %v722
    %731 = vst [vmem:[#allocation3 + $0x150] sm:$0xff] %v723
    %732 = vst [vmem:[#allocation3 + $0x158] sm:$0xff] %v724
    %733 = vst [vmem:[#allocation3 + $0x160] sm:$0xff] %v725
    %734 = vst [vmem:[#allocation3 + $0x168] sm:$0xff] %v726
    %735 = vst [vmem:[#allocation3 + $0x170] sm:$0xff] %v727
    %736 = vst [vmem:[#allocation3 + $0x178] sm:$0xff] %v728
    %737 = vrot.lane.b32.xlu0 %v270, 113
    %v738 = vpop.permute.xlu0 %737
    %739 = vrot.lane.b32.xlu0 %v274, 113
    %v740 = vpop.permute.xlu0 %739
    %741 = vrot.lane.b32.xlu0 %v278, 113
    %v742 = vpop.permute.xlu0 %741
    %743 = vrot.lane.b32.xlu0 %v282, 113
    %v744 = vpop.permute.xlu0 %743
    %745 = vrot.lane.b32.xlu0 %v271, 113
    %v746 = vpop.permute.xlu0 %745
    %747 = vrot.lane.b32.xlu0 %v275, 113
    %v748 = vpop.permute.xlu0 %747
    %749 = vrot.lane.b32.xlu0 %v279, 113
    %v750 = vpop.permute.xlu0 %749
    %751 = vrot.lane.b32.xlu0 %v283, 113
    %v752 = vpop.permute.xlu0 %751
    %753 = vrot.lane.b32.xlu0 %v272, 113
    %v754 = vpop.permute.xlu0 %753
    %755 = vrot.lane.b32.xlu0 %v276, 113
    %v756 = vpop.permute.xlu0 %755
    %757 = vrot.lane.b32.xlu0 %v280, 113
    %v758 = vpop.permute.xlu0 %757
    %759 = vrot.lane.b32.xlu0 %v284, 113
    %v760 = vpop.permute.xlu0 %759
    %761 = vrot.lane.b32.xlu0 %v273, 113
    %v762 = vpop.permute.xlu0 %761
    %763 = vrot.lane.b32.xlu0 %v277, 113
    %v764 = vpop.permute.xlu0 %763
    %765 = vrot.lane.b32.xlu0 %v281, 113
    %v766 = vpop.permute.xlu0 %765
    %767 = vrot.lane.b32.xlu0 %v285, 113
    %v768 = vpop.permute.xlu0 %767
    %vm769 = vcmp.lt.s32.totalorder %v327, 113
    %v770 = vsel %vm769, %v754, %v762
    %v771 = vsel %vm769, %v756, %v764
    %v772 = vsel %vm769, %v758, %v766
    %v773 = vsel %vm769, %v760, %v768
    %v774 = vsel %vm769, %v746, %v754
    %v775 = vsel %vm769, %v748, %v756
    %v776 = vsel %vm769, %v750, %v758
    %v777 = vsel %vm769, %v752, %v760
    %v778 = vsel %vm769, %v738, %v746
    %v779 = vsel %vm769, %v740, %v748
    %v780 = vsel %vm769, %v742, %v750
    %v781 = vsel %vm769, %v744, %v752
    %v782 = vsel %vm769, %v762, %v738
    %v783 = vsel %vm769, %v764, %v740
    %v784 = vsel %vm769, %v766, %v742
    %v785 = vsel %vm769, %v768, %v744
    %v786 = vperm.slane %v286, 6
    %v787 = vperm.slane %v287, 6
    %v788 = vperm.slane %v288, 6
    %v789 = vperm.slane %v289, 6
    %v790 = vmul.f32 %v778, %v786
    %v791 = vmul.f32 %v774, %v787
    %v792 = vmul.f32 %v770, %v788
    %v793 = vmul.f32 %v782, %v789
    %v794 = vmul.f32 %v779, %v786
    %v795 = vmul.f32 %v775, %v787
    %v796 = vmul.f32 %v771, %v788
    %v797 = vmul.f32 %v783, %v789
    %v798 = vmul.f32 %v780, %v786
    %v799 = vmul.f32 %v776, %v787
    %v800 = vmul.f32 %v772, %v788
    %v801 = vmul.f32 %v784, %v789
    %v802 = vmul.f32 %v781, %v786
    %v803 = vmul.f32 %v777, %v787
    %v804 = vmul.f32 %v773, %v788
    %v805 = vmul.f32 %v785, %v789
    %v806 = vpack.c.bf16 %v791, %v790
    %v807 = vpack.c.bf16 %v793, %v792
    %v808 = vpack.c.bf16 %v795, %v794
    %v809 = vpack.c.bf16 %v797, %v796
    %v810 = vpack.c.bf16 %v799, %v798
    %v811 = vpack.c.bf16 %v801, %v800
    %v812 = vpack.c.bf16 %v803, %v802
    %v813 = vpack.c.bf16 %v805, %v804
    %814 = vst [vmem:[#allocation3 + $0x180] sm:$0xff] %v806
    %815 = vst [vmem:[#allocation3 + $0x188] sm:$0xff] %v807
    %816 = vst [vmem:[#allocation3 + $0x190] sm:$0xff] %v808
    %817 = vst [vmem:[#allocation3 + $0x198] sm:$0xff] %v809
    %818 = vst [vmem:[#allocation3 + $0x1a0] sm:$0xff] %v810
    %819 = vst [vmem:[#allocation3 + $0x1a8] sm:$0xff] %v811
    %820 = vst [vmem:[#allocation3 + $0x1b0] sm:$0xff] %v812
    %821 = vst [vmem:[#allocation3 + $0x1b8] sm:$0xff] %v813
    %822 = vrot.lane.b32.xlu0 %v270, 112
    %v823 = vpop.permute.xlu0 %822
    %824 = vrot.lane.b32.xlu0 %v274, 112
    %v825 = vpop.permute.xlu0 %824
    %826 = vrot.lane.b32.xlu0 %v278, 112
    %v827 = vpop.permute.xlu0 %826
    %828 = vrot.lane.b32.xlu0 %v282, 112
    %v829 = vpop.permute.xlu0 %828
    %830 = vrot.lane.b32.xlu0 %v271, 112
    %v831 = vpop.permute.xlu0 %830
    %832 = vrot.lane.b32.xlu0 %v275, 112
    %v833 = vpop.permute.xlu0 %832
    %834 = vrot.lane.b32.xlu0 %v279, 112
    %v835 = vpop.permute.xlu0 %834
    %836 = vrot.lane.b32.xlu0 %v283, 112
    %v837 = vpop.permute.xlu0 %836
    %838 = vrot.lane.b32.xlu0 %v272, 112
    %v839 = vpop.permute.xlu0 %838
    %840 = vrot.lane.b32.xlu0 %v276, 112
    %v841 = vpop.permute.xlu0 %840
    %842 = vrot.lane.b32.xlu0 %v280, 112
    %v843 = vpop.permute.xlu0 %842
    %844 = vrot.lane.b32.xlu0 %v284, 112
    %v845 = vpop.permute.xlu0 %844
    %846 = vrot.lane.b32.xlu0 %v273, 112
    %v847 = vpop.permute.xlu0 %846
    %848 = vrot.lane.b32.xlu0 %v277, 112
    %v849 = vpop.permute.xlu0 %848
    %850 = vrot.lane.b32.xlu0 %v281, 112
    %v851 = vpop.permute.xlu0 %850
    %852 = vrot.lane.b32.xlu0 %v285, 112
    %v853 = vpop.permute.xlu0 %852
    %vm854 = vcmp.lt.s32.totalorder %v327, 112
    %v855 = vsel %vm854, %v839, %v847
    %v856 = vsel %vm854, %v841, %v849
    %v857 = vsel %vm854, %v843, %v851
    %v858 = vsel %vm854, %v845, %v853
    %v859 = vsel %vm854, %v831, %v839
    %v860 = vsel %vm854, %v833, %v841
    %v861 = vsel %vm854, %v835, %v843
    %v862 = vsel %vm854, %v837, %v845
    %v863 = vsel %vm854, %v823, %v831
    %v864 = vsel %vm854, %v825, %v833
    %v865 = vsel %vm854, %v827, %v835
    %v866 = vsel %vm854, %v829, %v837
    %v867 = vsel %vm854, %v847, %v823
    %v868 = vsel %vm854, %v849, %v825
    %v869 = vsel %vm854, %v851, %v827
    %v870 = vsel %vm854, %v853, %v829
    %v871 = vperm.slane %v286, 7
    %v872 = vperm.slane %v287, 7
    %v873 = vperm.slane %v288, 7
    %v874 = vperm.slane %v289, 7
    %v875 = vmul.f32 %v863, %v871
    %v876 = vmul.f32 %v859, %v872
    %v877 = vmul.f32 %v855, %v873
    %v878 = vmul.f32 %v867, %v874
    %v879 = vmul.f32 %v864, %v871
    %v880 = vmul.f32 %v860, %v872
    %v881 = vmul.f32 %v856, %v873
    %v882 = vmul.f32 %v868, %v874
    %v883 = vmul.f32 %v865, %v871
    %v884 = vmul.f32 %v861, %v872
    %v885 = vmul.f32 %v857, %v873
    %v886 = vmul.f32 %v869, %v874
    %v887 = vmul.f32 %v866, %v871
    %v888 = vmul.f32 %v862, %v872
    %v889 = vmul.f32 %v858, %v873
    %v890 = vmul.f32 %v870, %v874
    %v891 = vpack.c.bf16 %v876, %v875
    %v892 = vpack.c.bf16 %v878, %v877
    %v893 = vpack.c.bf16 %v880, %v879
    %v894 = vpack.c.bf16 %v882, %v881
    %v895 = vpack.c.bf16 %v884, %v883
    %v896 = vpack.c.bf16 %v886, %v885
    %v897 = vpack.c.bf16 %v888, %v887
    %v898 = vpack.c.bf16 %v890, %v889
    %899 = vst [vmem:[#allocation3 + $0x1c0] sm:$0xff] %v891
    %900 = vst [vmem:[#allocation3 + $0x1c8] sm:$0xff] %v892
    %901 = vst [vmem:[#allocation3 + $0x1d0] sm:$0xff] %v893
    %902 = vst [vmem:[#allocation3 + $0x1d8] sm:$0xff] %v894
    %903 = vst [vmem:[#allocation3 + $0x1e0] sm:$0xff] %v895
    %904 = vst [vmem:[#allocation3 + $0x1e8] sm:$0xff] %v896
    %905 = vst [vmem:[#allocation3 + $0x1f0] sm:$0xff] %v897
    %906 = vst [vmem:[#allocation3 + $0x1f8] sm:$0xff] %v898
    %907 = vrot.lane.b32.xlu0 %v270, 111
    %v908 = vpop.permute.xlu0 %907
    %909 = vrot.lane.b32.xlu0 %v274, 111
    %v910 = vpop.permute.xlu0 %909
    %911 = vrot.lane.b32.xlu0 %v278, 111
    %v912 = vpop.permute.xlu0 %911
    %913 = vrot.lane.b32.xlu0 %v282, 111
    %v914 = vpop.permute.xlu0 %913
    %915 = vrot.lane.b32.xlu0 %v271, 111
    %v916 = vpop.permute.xlu0 %915
    %917 = vrot.lane.b32.xlu0 %v275, 111
    %v918 = vpop.permute.xlu0 %917
    %919 = vrot.lane.b32.xlu0 %v279, 111
    %v920 = vpop.permute.xlu0 %919
    %921 = vrot.lane.b32.xlu0 %v283, 111
    %v922 = vpop.permute.xlu0 %921
    %923 = vrot.lane.b32.xlu0 %v272, 111
    %v924 = vpop.permute.xlu0 %923
    %925 = vrot.lane.b32.xlu0 %v276, 111
    %v926 = vpop.permute.xlu0 %925
    %927 = vrot.lane.b32.xlu0 %v280, 111
    %v928 = vpop.permute.xlu0 %927
    %929 = vrot.lane.b32.xlu0 %v284, 111
    %v930 = vpop.permute.xlu0 %929
    %931 = vrot.lane.b32.xlu0 %v273, 111
    %v932 = vpop.permute.xlu0 %931
    %933 = vrot.lane.b32.xlu0 %v277, 111
    %v934 = vpop.permute.xlu0 %933
    %935 = vrot.lane.b32.xlu0 %v281, 111
    %v936 = vpop.permute.xlu0 %935
    %937 = vrot.lane.b32.xlu0 %v285, 111
    %v938 = vpop.permute.xlu0 %937
    %vm939 = vcmp.lt.s32.totalorder %v327, 111
    %v940 = vsel %vm939, %v924, %v932
    %v941 = vsel %vm939, %v926, %v934
    %v942 = vsel %vm939, %v928, %v936
    %v943 = vsel %vm939, %v930, %v938
    %v944 = vsel %vm939, %v916, %v924
    %v945 = vsel %vm939, %v918, %v926
    %v946 = vsel %vm939, %v920, %v928
    %v947 = vsel %vm939, %v922, %v930
    %v948 = vsel %vm939, %v908, %v916
    %v949 = vsel %vm939, %v910, %v918
    %v950 = vsel %vm939, %v912, %v920
    %v951 = vsel %vm939, %v914, %v922
    %v952 = vsel %vm939, %v932, %v908
    %v953 = vsel %vm939, %v934, %v910
    %v954 = vsel %vm939, %v936, %v912
    %v955 = vsel %vm939, %v938, %v914
    %v956 = vperm.slane %v290, 0
    %v957 = vperm.slane %v291, 0
    %v958 = vperm.slane %v292, 0
    %v959 = vperm.slane %v293, 0
    %v960 = vmul.f32 %v948, %v956
    %v961 = vmul.f32 %v944, %v957
    %v962 = vmul.f32 %v940, %v958
    %v963 = vmul.f32 %v952, %v959
    %v964 = vmul.f32 %v949, %v956
    %v965 = vmul.f32 %v945, %v957
    %v966 = vmul.f32 %v941, %v958
    %v967 = vmul.f32 %v953, %v959
    %v968 = vmul.f32 %v950, %v956
    %v969 = vmul.f32 %v946, %v957
    %v970 = vmul.f32 %v942, %v958
    %v971 = vmul.f32 %v954, %v959
    %v972 = vmul.f32 %v951, %v956
    %v973 = vmul.f32 %v947, %v957
    %v974 = vmul.f32 %v943, %v958
    %v975 = vmul.f32 %v955, %v959
    %v976 = vpack.c.bf16 %v961, %v960
    %v977 = vpack.c.bf16 %v963, %v962
    %v978 = vpack.c.bf16 %v965, %v964
    %v979 = vpack.c.bf16 %v967, %v966
    %v980 = vpack.c.bf16 %v969, %v968
    %v981 = vpack.c.bf16 %v971, %v970
    %v982 = vpack.c.bf16 %v973, %v972
    %v983 = vpack.c.bf16 %v975, %v974
    %984 = vst [vmem:[#allocation3 + $0x200] sm:$0xff] %v976
    %985 = vst [vmem:[#allocation3 + $0x208] sm:$0xff] %v977
    %986 = vst [vmem:[#allocation3 + $0x210] sm:$0xff] %v978
    %987 = vst [vmem:[#allocation3 + $0x218] sm:$0xff] %v979
    %988 = vst [vmem:[#allocation3 + $0x220] sm:$0xff] %v980
    %989 = vst [vmem:[#allocation3 + $0x228] sm:$0xff] %v981
    %990 = vst [vmem:[#allocation3 + $0x230] sm:$0xff] %v982
    %991 = vst [vmem:[#allocation3 + $0x238] sm:$0xff] %v983
    %v992 = vld [vmem:[%s5] sm:$0xff]
    %v993 = vld [vmem:[%s5 + $0x8] sm:$0xf]
    %v994 = vld [vmem:[#allocation3] sm:$0xff]
    %v995 = vld [vmem:[#allocation3 + $0x8] sm:$0xff]
    %v996 = vld [vmem:[#allocation3 + $0x10] sm:$0xff]
    %v997 = vld [vmem:[#allocation3 + $0x18] sm:$0xff]
    %v998 = vld [vmem:[#allocation3 + $0x20] sm:$0xff]
    %v999 = vld [vmem:[#allocation3 + $0x28] sm:$0xff]
    %v1000 = vld [vmem:[#allocation3 + $0x30] sm:$0xff]
    %v1001 = vld [vmem:[#allocation3 + $0x38] sm:$0xff]
    %v1002 = vld [vmem:[#allocation3 + $0x40] sm:$0xff]
    %v1003 = vld [vmem:[#allocation3 + $0x48] sm:$0xff]
    %v1004 = vld [vmem:[#allocation3 + $0x50] sm:$0xff]
    %v1005 = vld [vmem:[#allocation3 + $0x58] sm:$0xff]
    %v1006 = vld [vmem:[#allocation3 + $0x60] sm:$0xff]
    %v1007 = vld [vmem:[#allocation3 + $0x68] sm:$0xff]
    %v1008 = vld [vmem:[#allocation3 + $0x70] sm:$0xff]
    %v1009 = vld [vmem:[#allocation3 + $0x78] sm:$0xff]
    %v1010 = vld [vmem:[#allocation3 + $0x80] sm:$0xff]
    %v1011 = vld [vmem:[#allocation3 + $0x88] sm:$0xff]
    %v1012 = vld [vmem:[#allocation3 + $0x90] sm:$0xff]
    %v1013 = vld [vmem:[#allocation3 + $0x98] sm:$0xff]
    %v1014 = vld [vmem:[#allocation3 + $0xa0] sm:$0xff]
    %v1015 = vld [vmem:[#allocation3 + $0xa8] sm:$0xff]
    %v1016 = vld [vmem:[#allocation3 + $0xb0] sm:$0xff]
    %v1017 = vld [vmem:[#allocation3 + $0xb8] sm:$0xff]
    %v1018 = vld [vmem:[#allocation3 + $0xc0] sm:$0xff]
    %v1019 = vld [vmem:[#allocation3 + $0xc8] sm:$0xff]
    %v1020 = vld [vmem:[#allocation3 + $0xd0] sm:$0xff]
    %v1021 = vld [vmem:[#allocation3 + $0xd8] sm:$0xff]
    %v1022 = vld [vmem:[#allocation3 + $0xe0] sm:$0xff]
    %v1023 = vld [vmem:[#allocation3 + $0xe8] sm:$0xff]
    %v1024 = vld [vmem:[#allocation3 + $0xf0] sm:$0xff]
    %v1025 = vld [vmem:[#allocation3 + $0xf8] sm:$0xff]
    %v1026 = vld [vmem:[#allocation3 + $0x100] sm:$0xff]
    %v1027 = vld [vmem:[#allocation3 + $0x108] sm:$0xff]
    %v1028 = vld [vmem:[#allocation3 + $0x110] sm:$0xff]
    %v1029 = vld [vmem:[#allocation3 + $0x118] sm:$0xff]
    %v1030 = vld [vmem:[#allocation3 + $0x120] sm:$0xff]
    %v1031 = vld [vmem:[#allocation3 + $0x128] sm:$0xff]
    %v1032 = vld [vmem:[#allocation3 + $0x130] sm:$0xff]
    %v1033 = vld [vmem:[#allocation3 + $0x138] sm:$0xff]
    %v1034 = vld [vmem:[#allocation3 + $0x140] sm:$0xff]
    %v1035 = vld [vmem:[#allocation3 + $0x148] sm:$0xff]
    %v1036 = vld [vmem:[#allocation3 + $0x150] sm:$0xff]
    %v1037 = vld [vmem:[#allocation3 + $0x158] sm:$0xff]
    %v1038 = vld [vmem:[#allocation3 + $0x160] sm:$0xff]
    %v1039 = vld [vmem:[#allocation3 + $0x168] sm:$0xff]
    %v1040 = vld [vmem:[#allocation3 + $0x170] sm:$0xff]
    %v1041 = vld [vmem:[#allocation3 + $0x178] sm:$0xff]
    %v1042 = vld [vmem:[#allocation3 + $0x180] sm:$0xff]
    %v1043 = vld [vmem:[#allocation3 + $0x188] sm:$0xff]
    %v1044 = vld [vmem:[#allocation3 + $0x190] sm:$0xff]
    %v1045 = vld [vmem:[#allocation3 + $0x198] sm:$0xff]
    %v1046 = vld [vmem:[#allocation3 + $0x1a0] sm:$0xff]
    %v1047 = vld [vmem:[#allocation3 + $0x1a8] sm:$0xff]
    %v1048 = vld [vmem:[#allocation3 + $0x1b0] sm:$0xff]
    %v1049 = vld [vmem:[#allocation3 + $0x1b8] sm:$0xff]
    %v1050 = vld [vmem:[#allocation3 + $0x1c0] sm:$0xff]
    %v1051 = vld [vmem:[#allocation3 + $0x1c8] sm:$0xff]
    %v1052 = vld [vmem:[#allocation3 + $0x1d0] sm:$0xff]
    %v1053 = vld [vmem:[#allocation3 + $0x1d8] sm:$0xff]
    %v1054 = vld [vmem:[#allocation3 + $0x1e0] sm:$0xff]
    %v1055 = vld [vmem:[#allocation3 + $0x1e8] sm:$0xff]
    %v1056 = vld [vmem:[#allocation3 + $0x1f0] sm:$0xff]
    %v1057 = vld [vmem:[#allocation3 + $0x1f8] sm:$0xff]
    %v1058 = vld [vmem:[#allocation3 + $0x200] sm:$0xff]
    %v1059 = vld [vmem:[#allocation3 + $0x208] sm:$0xff]
    %v1060 = vld [vmem:[#allocation3 + $0x210] sm:$0xff]
    %v1061 = vld [vmem:[#allocation3 + $0x218] sm:$0xff]
    %v1062 = vld [vmem:[#allocation3 + $0x220] sm:$0xff]
    %v1063 = vld [vmem:[#allocation3 + $0x228] sm:$0xff]
    %v1064 = vld [vmem:[#allocation3 + $0x230] sm:$0xff]
    %v1065 = vld [vmem:[#allocation3 + $0x238] sm:$0xff]
    %v1068 = vunpack.c.l.b16 %v992
    %v1069 = vunpack.c.h.b16 %v992
    %v1070 = vunpack.c.l.b16 %v993
    %v1071 = vpack.c.b16 %v1068, %v1068
    %v1072 = vpack.c.b16 %v1069, %v1069
    %v1073 = vpack.c.b16 %v1070, %v1070
    %v1148 = vunpack.c.l.b16 %v994
    %v1149 = vunpack.c.h.b16 %v994
    %v1150 = vunpack.c.l.b16 %v995
    %v1151 = vunpack.c.h.b16 %v995
    %v1152 = vunpack.c.l.b16 %v996
    %v1153 = vunpack.c.h.b16 %v996
    %v1154 = vunpack.c.l.b16 %v997
    %v1155 = vunpack.c.h.b16 %v997
    %v1156 = vunpack.c.l.b16 %v998
    %v1157 = vunpack.c.h.b16 %v998
    %v1158 = vunpack.c.l.b16 %v999
    %v1159 = vunpack.c.h.b16 %v999
    %v1160 = vunpack.c.l.b16 %v1000
    %v1161 = vunpack.c.h.b16 %v1000
    %v1162 = vunpack.c.l.b16 %v1001
    %v1163 = vunpack.c.h.b16 %v1001
    %v1164 = vunpack.c.l.b16 %v1002
    %v1165 = vunpack.c.h.b16 %v1002
    %v1166 = vunpack.c.l.b16 %v1003
    %v1167 = vunpack.c.h.b16 %v1003
    %v1168 = vunpack.c.l.b16 %v1004
    %v1169 = vunpack.c.h.b16 %v1004
    %v1170 = vunpack.c.l.b16 %v1005
    %v1171 = vunpack.c.h.b16 %v1005
    %v1172 = vunpack.c.l.b16 %v1006
    %v1173 = vunpack.c.h.b16 %v1006
    %v1174 = vunpack.c.l.b16 %v1007
    %v1175 = vunpack.c.h.b16 %v1007
    %v1176 = vunpack.c.l.b16 %v1008
    %v1177 = vunpack.c.h.b16 %v1008
    %v1178 = vunpack.c.l.b16 %v1009
    %v1179 = vunpack.c.h.b16 %v1009
    %v1180 = vunpack.c.l.b16 %v1010
    %v1181 = vunpack.c.h.b16 %v1010
    %v1182 = vunpack.c.l.b16 %v1011
    %v1183 = vunpack.c.h.b16 %v1011
    %v1184 = vunpack.c.l.b16 %v1012
    %v1185 = vunpack.c.h.b16 %v1012
    %v1186 = vunpack.c.l.b16 %v1013
    %v1187 = vunpack.c.h.b16 %v1013
    %v1188 = vunpack.c.l.b16 %v1014
    %v1189 = vunpack.c.h.b16 %v1014
    %v1190 = vunpack.c.l.b16 %v1015
    %v1191 = vunpack.c.h.b16 %v1015
    %v1192 = vunpack.c.l.b16 %v1016
    %v1193 = vunpack.c.h.b16 %v1016
    %v1194 = vunpack.c.l.b16 %v1017
    %v1195 = vunpack.c.h.b16 %v1017
    %v1196 = vunpack.c.l.b16 %v1018
    %v1197 = vunpack.c.h.b16 %v1018
    %v1198 = vunpack.c.l.b16 %v1019
    %v1199 = vunpack.c.h.b16 %v1019
    %v1200 = vunpack.c.l.b16 %v1020
    %v1201 = vunpack.c.h.b16 %v1020
    %v1202 = vunpack.c.l.b16 %v1021
    %v1203 = vunpack.c.h.b16 %v1021
    %v1204 = vunpack.c.l.b16 %v1022
    %v1205 = vunpack.c.h.b16 %v1022
    %v1206 = vunpack.c.l.b16 %v1023
    %v1207 = vunpack.c.h.b16 %v1023
    %v1208 = vunpack.c.l.b16 %v1024
    %v1209 = vunpack.c.h.b16 %v1024
    %v1210 = vunpack.c.l.b16 %v1025
    %v1211 = vunpack.c.h.b16 %v1025
    %v1212 = vunpack.c.l.b16 %v1026
    %v1213 = vunpack.c.h.b16 %v1026
    %v1214 = vunpack.c.l.b16 %v1027
    %v1215 = vunpack.c.h.b16 %v1027
    %v1216 = vunpack.c.l.b16 %v1028
    %v1217 = vunpack.c.h.b16 %v1028
    %v1218 = vunpack.c.l.b16 %v1029
    %v1219 = vunpack.c.h.b16 %v1029
    %v1220 = vunpack.c.l.b16 %v1030
    %v1221 = vunpack.c.h.b16 %v1030
    %v1222 = vunpack.c.l.b16 %v1031
    %v1223 = vunpack.c.h.b16 %v1031
    %v1224 = vunpack.c.l.b16 %v1032
    %v1225 = vunpack.c.h.b16 %v1032
    %v1226 = vunpack.c.l.b16 %v1033
    %v1227 = vunpack.c.h.b16 %v1033
    %v1228 = vunpack.c.l.b16 %v1034
    %v1229 = vunpack.c.h.b16 %v1034
    %v1230 = vunpack.c.l.b16 %v1035
    %v1231 = vunpack.c.h.b16 %v1035
    %v1232 = vunpack.c.l.b16 %v1036
    %v1233 = vunpack.c.h.b16 %v1036
    %v1234 = vunpack.c.l.b16 %v1037
    %v1235 = vunpack.c.h.b16 %v1037
    %v1236 = vunpack.c.l.b16 %v1038
    %v1237 = vunpack.c.h.b16 %v1038
    %v1238 = vunpack.c.l.b16 %v1039
    %v1239 = vunpack.c.h.b16 %v1039
    %v1240 = vunpack.c.l.b16 %v1040
    %v1241 = vunpack.c.h.b16 %v1040
    %v1242 = vunpack.c.l.b16 %v1041
    %v1243 = vunpack.c.h.b16 %v1041
    %v1244 = vunpack.c.l.b16 %v1042
    %v1245 = vunpack.c.h.b16 %v1042
    %v1246 = vunpack.c.l.b16 %v1043
    %v1247 = vunpack.c.h.b16 %v1043
    %v1248 = vunpack.c.l.b16 %v1044
    %v1249 = vunpack.c.h.b16 %v1044
    %v1250 = vunpack.c.l.b16 %v1045
    %v1251 = vunpack.c.h.b16 %v1045
    %v1252 = vunpack.c.l.b16 %v1046
    %v1253 = vunpack.c.h.b16 %v1046
    %v1254 = vunpack.c.l.b16 %v1047
    %v1255 = vunpack.c.h.b16 %v1047
    %v1256 = vunpack.c.l.b16 %v1048
    %v1257 = vunpack.c.h.b16 %v1048
    %v1258 = vunpack.c.l.b16 %v1049
    %v1259 = vunpack.c.h.b16 %v1049
    %v1260 = vunpack.c.l.b16 %v1050
    %v1261 = vunpack.c.h.b16 %v1050
    %v1262 = vunpack.c.l.b16 %v1051
    %v1263 = vunpack.c.h.b16 %v1051
    %v1264 = vunpack.c.l.b16 %v1052
    %v1265 = vunpack.c.h.b16 %v1052
    %v1266 = vunpack.c.l.b16 %v1053
    %v1267 = vunpack.c.h.b16 %v1053
    %v1268 = vunpack.c.l.b16 %v1054
    %v1269 = vunpack.c.h.b16 %v1054
    %v1270 = vunpack.c.l.b16 %v1055
    %v1271 = vunpack.c.h.b16 %v1055
    %v1272 = vunpack.c.l.b16 %v1056
    %v1273 = vunpack.c.h.b16 %v1056
    %v1274 = vunpack.c.l.b16 %v1057
    %v1275 = vunpack.c.h.b16 %v1057
    %v1276 = vunpack.c.l.b16 %v1058
    %v1277 = vunpack.c.h.b16 %v1058
    %v1278 = vunpack.c.l.b16 %v1059
    %v1279 = vunpack.c.h.b16 %v1059
    %v1280 = vunpack.c.l.b16 %v1060
    %v1281 = vunpack.c.h.b16 %v1060
    %v1282 = vunpack.c.l.b16 %v1061
    %v1283 = vunpack.c.h.b16 %v1061
    %v1284 = vunpack.c.l.b16 %v1062
    %v1285 = vunpack.c.h.b16 %v1062
    %v1286 = vunpack.c.l.b16 %v1063
    %v1287 = vunpack.c.h.b16 %v1063
    %v1288 = vunpack.c.l.b16 %v1064
    %v1289 = vunpack.c.h.b16 %v1064
    %v1290 = vunpack.c.l.b16 %v1065
    %v1291 = vunpack.c.h.b16 %v1065
    %v1292 = vpack.c.b16 %v1152, %v1148
    %v1293 = vpack.c.b16 %v1153, %v1149
    %v1294 = vpack.c.b16 %v1154, %v1150
    %v1295 = vpack.c.b16 %v1155, %v1151
    %v1296 = vpack.c.b16 %v1160, %v1156
    %v1297 = vpack.c.b16 %v1161, %v1157
    %v1298 = vpack.c.b16 %v1162, %v1158
    %v1299 = vpack.c.b16 %v1163, %v1159
    %v1300 = vpack.c.b16 %v1168, %v1164
    %v1301 = vpack.c.b16 %v1169, %v1165
    %v1302 = vpack.c.b16 %v1170, %v1166
    %v1303 = vpack.c.b16 %v1171, %v1167
    %v1304 = vpack.c.b16 %v1176, %v1172
    %v1305 = vpack.c.b16 %v1177, %v1173
    %v1306 = vpack.c.b16 %v1178, %v1174
    %v1307 = vpack.c.b16 %v1179, %v1175
    %v1308 = vpack.c.b16 %v1184, %v1180
    %v1309 = vpack.c.b16 %v1185, %v1181
    %v1310 = vpack.c.b16 %v1186, %v1182
    %v1311 = vpack.c.b16 %v1187, %v1183
    %v1312 = vpack.c.b16 %v1192, %v1188
    %v1313 = vpack.c.b16 %v1193, %v1189
    %v1314 = vpack.c.b16 %v1194, %v1190
    %v1315 = vpack.c.b16 %v1195, %v1191
    %v1316 = vpack.c.b16 %v1200, %v1196
    %v1317 = vpack.c.b16 %v1201, %v1197
    %v1318 = vpack.c.b16 %v1202, %v1198
    %v1319 = vpack.c.b16 %v1203, %v1199
    %v1320 = vpack.c.b16 %v1208, %v1204
    %v1321 = vpack.c.b16 %v1209, %v1205
    %v1322 = vpack.c.b16 %v1210, %v1206
    %v1323 = vpack.c.b16 %v1211, %v1207
    %v1324 = vpack.c.b16 %v1216, %v1212
    %v1325 = vpack.c.b16 %v1217, %v1213
    %v1326 = vpack.c.b16 %v1218, %v1214
    %v1327 = vpack.c.b16 %v1219, %v1215
    %v1328 = vpack.c.b16 %v1224, %v1220
    %v1329 = vpack.c.b16 %v1225, %v1221
    %v1330 = vpack.c.b16 %v1226, %v1222
    %v1331 = vpack.c.b16 %v1227, %v1223
    %v1332 = vpack.c.b16 %v1232, %v1228
    %v1333 = vpack.c.b16 %v1233, %v1229
    %v1334 = vpack.c.b16 %v1234, %v1230
    %v1335 = vpack.c.b16 %v1235, %v1231
    %v1336 = vpack.c.b16 %v1240, %v1236
    %v1337 = vpack.c.b16 %v1241, %v1237
    %v1338 = vpack.c.b16 %v1242, %v1238
    %v1339 = vpack.c.b16 %v1243, %v1239
    %v1340 = vpack.c.b16 %v1248, %v1244
    %v1341 = vpack.c.b16 %v1249, %v1245
    %v1342 = vpack.c.b16 %v1250, %v1246
    %v1343 = vpack.c.b16 %v1251, %v1247
    %v1344 = vpack.c.b16 %v1256, %v1252
    %v1345 = vpack.c.b16 %v1257, %v1253
    %v1346 = vpack.c.b16 %v1258, %v1254
    %v1347 = vpack.c.b16 %v1259, %v1255
    %v1348 = vpack.c.b16 %v1264, %v1260
    %v1349 = vpack.c.b16 %v1265, %v1261
    %v1350 = vpack.c.b16 %v1266, %v1262
    %v1351 = vpack.c.b16 %v1267, %v1263
    %v1352 = vpack.c.b16 %v1272, %v1268
    %v1353 = vpack.c.b16 %v1273, %v1269
    %v1354 = vpack.c.b16 %v1274, %v1270
    %v1355 = vpack.c.b16 %v1275, %v1271
    %v1356 = vpack.c.b16 %v1280, %v1276
    %v1357 = vpack.c.b16 %v1281, %v1277
    %v1358 = vpack.c.b16 %v1282, %v1278
    %v1359 = vpack.c.b16 %v1283, %v1279
    %v1360 = vpack.c.b16 %v1288, %v1284
    %v1361 = vpack.c.b16 %v1289, %v1285
    %v1362 = vpack.c.b16 %v1290, %v1286
    %v1363 = vpack.c.b16 %v1291, %v1287
    %vm1436 = vcmask 261120
    %v1438 = vsel %vm1436, %v1073, 0
    %1440 = vmatpush.bf16.msra.mxu0 %v1320
    %1441 = vmatpush.bf16.msra.mxu0 %v1316
    %1442 = vmatpush.bf16.msra.mxu0 %v1312
    %1443 = vmatpush.bf16.msra.mxu0 %v1308
    %1444 = vmatpush.bf16.msra.mxu0 %v1304
    %1445 = vmatpush.bf16.msra.mxu0 %v1300
    %1446 = vmatpush.bf16.msra.mxu0 %v1296
    %1447 = vmatpush.bf16.msra.mxu0 %v1292
    %1448 = vmatmul.bf16.gmra.mxu0 %v1071
    %v1449 = vpop.f32.mrf.mxu0
    %v1450 = vadd.f32 0.0, %v1449
    %v1451 = vpop.f32.mrf.mxu0
    %1452 = vdwg.mxu0
    %1453 = vmatpush.bf16.msra.mxu0 %v1352
    %1454 = vmatpush.bf16.msra.mxu0 %v1348
    %1455 = vmatpush.bf16.msra.mxu0 %v1344
    %1456 = vmatpush.bf16.msra.mxu0 %v1340
    %1457 = vmatpush.bf16.msra.mxu0 %v1336
    %1458 = vmatpush.bf16.msra.mxu0 %v1332
    %1459 = vmatpush.bf16.msra.mxu0 %v1328
    %1460 = vmatpush.bf16.msra.mxu0 %v1324
    %1461 = vmatmul.bf16.gmra.mxu0 %v1072
    %v1462 = vpop.f32.mrf.mxu0
    %v1463 = vadd.f32 %v1450, %v1462
    %v1464 = vpop.f32.mrf.mxu0
    %1465 = vdwg.mxu0
    %1466 = vmatpush.bf16.msra.mxu0 0
    %1467 = vmatpush.bf16.msra.mxu0 0
    %1468 = vmatpush.bf16.msra.mxu0 0
    %1469 = vmatpush.bf16.msra.mxu0 0
    %1470 = vmatpush.bf16.msra.mxu0 0
    %1471 = vmatpush.bf16.msra.mxu0 0
    %1472 = vmatpush.bf16.msra.mxu0 %v1360
    %1473 = vmatpush.bf16.msra.mxu0 %v1356
    %1474 = vmatmul.bf16.gmra.mxu0 %v1438
    %v1475 = vpop.f32.mrf.mxu0
    %v1476 = vadd.f32 %v1463, %v1475
    %v1477 = vpop.f32.mrf.mxu0
    %1478 = vdwg.mxu0
    %1479 = vmatpush.bf16.msra.mxu0 %v1321
    %1480 = vmatpush.bf16.msra.mxu0 %v1317
    %1481 = vmatpush.bf16.msra.mxu0 %v1313
    %1482 = vmatpush.bf16.msra.mxu0 %v1309
    %1483 = vmatpush.bf16.msra.mxu0 %v1305
    %1484 = vmatpush.bf16.msra.mxu0 %v1301
    %1485 = vmatpush.bf16.msra.mxu0 %v1297
    %1486 = vmatpush.bf16.msra.mxu0 %v1293
    %1487 = vmatmul.bf16.gmra.mxu0 %v1071
    %v1488 = vpop.f32.mrf.mxu0
    %v1489 = vadd.f32 0.0, %v1488
    %v1490 = vpop.f32.mrf.mxu0
    %1491 = vdwg.mxu0
    %1492 = vmatpush.bf16.msra.mxu0 %v1353
    %1493 = vmatpush.bf16.msra.mxu0 %v1349
    %1494 = vmatpush.bf16.msra.mxu0 %v1345
    %1495 = vmatpush.bf16.msra.mxu0 %v1341
    %1496 = vmatpush.bf16.msra.mxu0 %v1337
    %1497 = vmatpush.bf16.msra.mxu0 %v1333
    %1498 = vmatpush.bf16.msra.mxu0 %v1329
    %1499 = vmatpush.bf16.msra.mxu0 %v1325
    %1500 = vmatmul.bf16.gmra.mxu0 %v1072
    %v1501 = vpop.f32.mrf.mxu0
    %v1502 = vadd.f32 %v1489, %v1501
    %v1503 = vpop.f32.mrf.mxu0
    %1504 = vdwg.mxu0
    %1505 = vmatpush.bf16.msra.mxu0 0
    %1506 = vmatpush.bf16.msra.mxu0 0
    %1507 = vmatpush.bf16.msra.mxu0 0
    %1508 = vmatpush.bf16.msra.mxu0 0
    %1509 = vmatpush.bf16.msra.mxu0 0
    %1510 = vmatpush.bf16.msra.mxu0 0
    %1511 = vmatpush.bf16.msra.mxu0 %v1361
    %1512 = vmatpush.bf16.msra.mxu0 %v1357
    %1513 = vmatmul.bf16.gmra.mxu0 %v1438
    %v1514 = vpop.f32.mrf.mxu0
    %v1515 = vadd.f32 %v1502, %v1514
    %v1516 = vpop.f32.mrf.mxu0
    %1517 = vdwg.mxu0
    %1518 = vmatpush.bf16.msra.mxu0 %v1322
    %1519 = vmatpush.bf16.msra.mxu0 %v1318
    %1520 = vmatpush.bf16.msra.mxu0 %v1314
    %1521 = vmatpush.bf16.msra.mxu0 %v1310
    %1522 = vmatpush.bf16.msra.mxu0 %v1306
    %1523 = vmatpush.bf16.msra.mxu0 %v1302
    %1524 = vmatpush.bf16.msra.mxu0 %v1298
    %1525 = vmatpush.bf16.msra.mxu0 %v1294
    %1526 = vmatmul.bf16.gmra.mxu0 %v1071
    %v1527 = vpop.f32.mrf.mxu0
    %v1528 = vadd.f32 0.0, %v1527
    %v1529 = vpop.f32.mrf.mxu0
    %1530 = vdwg.mxu0
    %1531 = vmatpush.bf16.msra.mxu0 %v1354
    %1532 = vmatpush.bf16.msra.mxu0 %v1350
    %1533 = vmatpush.bf16.msra.mxu0 %v1346
    %1534 = vmatpush.bf16.msra.mxu0 %v1342
    %1535 = vmatpush.bf16.msra.mxu0 %v1338
    %1536 = vmatpush.bf16.msra.mxu0 %v1334
    %1537 = vmatpush.bf16.msra.mxu0 %v1330
    %1538 = vmatpush.bf16.msra.mxu0 %v1326
    %1539 = vmatmul.bf16.gmra.mxu0 %v1072
    %v1540 = vpop.f32.mrf.mxu0
    %v1541 = vadd.f32 %v1528, %v1540
    %v1542 = vpop.f32.mrf.mxu0
    %1543 = vdwg.mxu0
    %1544 = vmatpush.bf16.msra.mxu0 0
    %1545 = vmatpush.bf16.msra.mxu0 0
    %1546 = vmatpush.bf16.msra.mxu0 0
    %1547 = vmatpush.bf16.msra.mxu0 0
    %1548 = vmatpush.bf16.msra.mxu0 0
    %1549 = vmatpush.bf16.msra.mxu0 0
    %1550 = vmatpush.bf16.msra.mxu0 %v1362
    %1551 = vmatpush.bf16.msra.mxu0 %v1358
    %1552 = vmatmul.bf16.gmra.mxu0 %v1438
    %v1553 = vpop.f32.mrf.mxu0
    %v1554 = vadd.f32 %v1541, %v1553
    %v1555 = vpop.f32.mrf.mxu0
    %1556 = vdwg.mxu0
    %1557 = vmatpush.bf16.msra.mxu0 %v1323
    %1558 = vmatpush.bf16.msra.mxu0 %v1319
    %1559 = vmatpush.bf16.msra.mxu0 %v1315
    %1560 = vmatpush.bf16.msra.mxu0 %v1311
    %1561 = vmatpush.bf16.msra.mxu0 %v1307
    %1562 = vmatpush.bf16.msra.mxu0 %v1303
    %1563 = vmatpush.bf16.msra.mxu0 %v1299
    %1564 = vmatpush.bf16.msra.mxu0 %v1295
    %1565 = vmatmul.bf16.gmra.mxu0 %v1071
    %v1566 = vpop.f32.mrf.mxu0
    %v1567 = vadd.f32 0.0, %v1566
    %v1568 = vpop.f32.mrf.mxu0
    %1569 = vdwg.mxu0
    %1570 = vmatpush.bf16.msra.mxu0 %v1355
    %1571 = vmatpush.bf16.msra.mxu0 %v1351
    %1572 = vmatpush.bf16.msra.mxu0 %v1347
    %1573 = vmatpush.bf16.msra.mxu0 %v1343
    %1574 = vmatpush.bf16.msra.mxu0 %v1339
    %1575 = vmatpush.bf16.msra.mxu0 %v1335
    %1576 = vmatpush.bf16.msra.mxu0 %v1331
    %1577 = vmatpush.bf16.msra.mxu0 %v1327
    %1578 = vmatmul.bf16.gmra.mxu0 %v1072
    %v1579 = vpop.f32.mrf.mxu0
    %v1580 = vadd.f32 %v1567, %v1579
    %v1581 = vpop.f32.mrf.mxu0
    %1582 = vdwg.mxu0
    %1583 = vmatpush.bf16.msra.mxu0 0
    %1584 = vmatpush.bf16.msra.mxu0 0
    %1585 = vmatpush.bf16.msra.mxu0 0
    %1586 = vmatpush.bf16.msra.mxu0 0
    %1587 = vmatpush.bf16.msra.mxu0 0
    %1588 = vmatpush.bf16.msra.mxu0 0
    %1589 = vmatpush.bf16.msra.mxu0 %v1363
    %1590 = vmatpush.bf16.msra.mxu0 %v1359
    %1591 = vmatmul.bf16.gmra.mxu0 %v1438
    %v1592 = vpop.f32.mrf.mxu0
    %v1593 = vadd.f32 %v1580, %v1592
    %v1594 = vpop.f32.mrf.mxu0
    %1595 = vdwg.mxu0
    %1596 = vst [vmem:[#allocation9] sm:$0xff] %v1476
    %1597 = vst [vmem:[#allocation9 + $0x8] sm:$0xff] %v1515
    %s1598 = scalar_lea.vmem [#allocation9], 16
    %1599 = vst [vmem:[%s1598] sm:$0xff] %v1554
    %1600 = vst [vmem:[%s1598 + $0x8] sm:$0xff] %v1593
    // Predicated region
    $region38: #{tpu_custom_call.1} parent=1 // pred_check
      _
    $region39: #{tpu_custom_call.1} parent=1 // pred_check_branch
      %1602 = sbr.rel (0) target = $region41
    $region40: #{tpu_custom_call.1} parent=1 // pred_region
      %1604 = vsyncadd [#allocation6], 0
      %s1605 = sshll.u32 [#allocation9], 4
      %s1606 = int_to_ptr.vmem [resolvable:$true] %s1605
      %s1607 = sshll.u32 %s7, 4
      %s1608 = int_to_ptr.hbm [resolvable:$true] %s1607
      %1613 = dma.vmem_to_hbm [thread:$0]  %s1606, 512, %s1608, [#allocation6], 256, 256, 16
    $region41: #{tpu_custom_call.1} parent=1 // pred_fallthru
      _
    // Predicated region
    $region42: #{tpu_custom_call.1} parent=1 // pred_check
      _
    $region43: #{tpu_custom_call.1} parent=1 // pred_check_branch
      %1615 = sbr.rel (0) target = $region45
    $region44: #{tpu_custom_call.1} parent=1 // pred_region
      %1617 = dma.done [#allocation6], 512
    $region45: #{tpu_custom_call.1} parent=1 // pred_fallthru
      _
    %1618 = vsyncpa [#allocation5], 1
    %1619 = vsyncpa [#allocation8], 1
    %1620 = vsyncpa [#allocation6], 1

</llo_original>
